<compile_context>
chip_gen: v7x
topology: tpu7x:2x2x1
jax: 0.10.0
libtpu: 0.0.40
codegen_flags: <defaults>
</compile_context>

<pallas_src>
import functools

import jax
import jax.numpy as jnp
from jax.experimental import pallas as pl
from jax.experimental.pallas import tpu as pltpu


VMEM_LIMIT_BYTES = 32 * 1024 * 1024   # > v5e's 16 MiB scoped default, < v7x 64 MiB


# ----------------------------------------------------------------------------
# Kernel A: out[OutC, S_tile] = relu?(W @ P + b)   (lane-dense output)
# ----------------------------------------------------------------------------
def _gemm_t_kernel(w_ref, p_ref, b_ref, o_ref, *, apply_relu):
    acc = jnp.dot(w_ref[...], p_ref[...], preferred_element_type=jnp.float32)
    acc = acc + b_ref[...]                       # (OutC, 1) broadcasts over lanes
    if apply_relu:
        acc = jnp.maximum(acc, 0.0)
    o_ref[...] = acc.astype(o_ref.dtype)


def _pick_spatial_tile(s, cap=4096):
    """Lane-dense spatial tile: full S when small, else >=2 tiles (megacore),
    rounded to a multiple of 128, capped so double-buffered VMEM stays small."""
    if s <= 256:
        return s
    half = -(-s // 2)                 # ceil(s/2) -> at least 2 parallel tiles
    tile = -(-half // 128) * 128      # round up to lane multiple
    return min(tile, cap)


def conv_gemm_t(wmat, patches_t, bias_col, *, apply_relu, out_dtype=jnp.bfloat16):
    """wmat: (OutC, K) bf16; patches_t: (K, S) bf16; bias_col: (OutC, 1) f32."""
    outc, k = wmat.shape
    k2, s = patches_t.shape
    assert k == k2, (k, k2)

    tile_s = _pick_spatial_tile(s)
    grid = (pl.cdiv(s, tile_s),)
    kernel = functools.partial(_gemm_t_kernel, apply_relu=apply_relu)

    flops = 2 * outc * k * s
    bytes_accessed = 2 * (outc * k + k * s) + 4 * outc + outc * s * jnp.dtype(out_dtype).itemsize

    return pl.pallas_call(
        kernel,
        out_shape=jax.ShapeDtypeStruct((outc, s), out_dtype),
        grid=grid,
        in_specs=[
            pl.BlockSpec((outc, k), lambda j: (0, 0)),       # weight: resident
            pl.BlockSpec((k, tile_s), lambda j: (0, j)),     # patches: tiled over S
            pl.BlockSpec((outc, 1), lambda j: (0, 0)),       # bias column
        ],
        out_specs=pl.BlockSpec((outc, tile_s), lambda j: (0, j)),
        compiler_params=pltpu.CompilerParams(
            dimension_semantics=("parallel",),
            vmem_limit_bytes=VMEM_LIMIT_BYTES),
        cost_estimate=pl.CostEstimate(
            flops=flops, transcendentals=0, bytes_accessed=bytes_accessed),
    )(wmat, patches_t, bias_col)


# ----------------------------------------------------------------------------
# Kernel B: fused tail = conv2 + ReLU + conv3 + ReLU + flatten + fc1 + ReLU + fc2
#           (used when conv3's spatial output is 1x1, e.g. 36x36 inputs)
# ----------------------------------------------------------------------------
def _tail_kernel(p2_ref, w2_ref, b2_ref, w3_ref, b3_ref, w1_ref, b1_ref,
                 wq_ref, bq_ref, o_ref, *, kh3, kw3, w2_dim, nb):
    # conv2: (64, S2) = relu(W2m @ P2 + b2); stays resident in VMEM/vregs.
    a2 = jnp.dot(w2_ref[...], p2_ref[...], preferred_element_type=jnp.float32)
    a2 = jnp.maximum(a2 + b2_ref[...], 0.0).astype(jnp.bfloat16)

    # conv3 (1x1 output): 9 tap matmuls; with batch-minor column order each
    # tap's inputs are a CONTIGUOUS column block of a2 -> no strided gather.
    c3 = w3_ref.shape[1]
    acc = jnp.zeros((c3, nb), jnp.float32)
    for i in range(kh3):
        for j in range(kw3):
            col = (i * w2_dim + j) * nb
            acc = acc + jnp.dot(w3_ref[i * kw3 + j], a2[:, col:col + nb],
                                preferred_element_type=jnp.float32)
    a3 = jnp.maximum(acc + b3_ref[...], 0.0).astype(jnp.bfloat16)   # (64, N)

    # flatten is the identity here (1x1 spatial); fc head in transposed form.
    h = jnp.dot(w1_ref[...], a3, preferred_element_type=jnp.float32)
    h = jnp.maximum(h + b1_ref[...], 0.0).astype(jnp.bfloat16)      # (512, N)
    q = jnp.dot(wq_ref[...], h, preferred_element_type=jnp.float32) + bq_ref[...]
    o_ref[...] = q                                                  # (O, N) f32


def fused_tail(p2, params, *, n, w2_dim):
    out_dim = params["fc2_w"].shape[0]
    k2, s2 = p2.shape
    kh3 = kw3 = 3
    kernel = functools.partial(_tail_kernel, kh3=kh3, kw3=kw3, w2_dim=w2_dim, nb=n)

    flops = 2 * (64 * k2 * s2 + kh3 * kw3 * 64 * 64 * n + 512 * 64 * n + out_dim * 512 * n)
    bytes_accessed = (2 * (k2 * s2 + 64 * k2 + kh3 * kw3 * 64 * 64 + 512 * 64 + out_dim * 512)
                      + 4 * (64 + 64 + 512 + out_dim + out_dim * n))

    vmem = pl.BlockSpec(memory_space=pltpu.MemorySpace.VMEM)
    return pl.pallas_call(
        kernel,
        out_shape=jax.ShapeDtypeStruct((out_dim, n), jnp.float32),
        in_specs=[vmem] * 9,
        out_specs=vmem,
        compiler_params=pltpu.CompilerParams(vmem_limit_bytes=VMEM_LIMIT_BYTES),
        cost_estimate=pl.CostEstimate(
            flops=flops, transcendentals=0, bytes_accessed=bytes_accessed),
    )(p2, params["w2m"], params["b2"], params["w3t"], params["b3"],
      params["fc1_w"], params["fc1_b"], params["fc2_w"], params["fc2_b"])


# ----------------------------------------------------------------------------
# XLA glue: im2col in channel-first / batch-last layout (C, H, W, N)
# ----------------------------------------------------------------------------
def _im2col_chwn(x_chwn, kh, kw, st):
    """(C, H, W, N) -> (C*KH*KW, OH*OW*N); features (c,i,j), columns (oh,ow,n)."""
    c, h, w, n = x_chwn.shape
    oh = (h - kh) // st + 1
    ow = (w - kw) // st + 1
    cols = []
    for i in range(kh):
        for j in range(kw):
            cols.append(x_chwn[:, i:i + st * oh:st, j:j + st * ow:st, :])
    p = jnp.stack(cols, axis=1)                       # (C, KH*KW, OH, OW, N)
    return p.reshape(c * kh * kw, oh * ow * n), oh, ow


# ----------------------------------------------------------------------------
# Qnetwork parameters (prepacked) + forward
# ----------------------------------------------------------------------------
def _conv_out(s, k, st):
    return (s - k) // st + 1


def init_qnetwork_params(key, input_shape, output_space):
    c, h, w = input_shape
    h1, w1 = _conv_out(h, 8, 4), _conv_out(w, 8, 4)
    h2, w2 = _conv_out(h1, 4, 2), _conv_out(w1, 4, 2)
    h3, w3 = _conv_out(h2, 3, 1), _conv_out(w2, 3, 1)
    fc_in = 64 * h3 * w3

    keys = jax.random.split(key, 10)

    def uinit(k_, shape, fan_in):
        bound = 1.0 / float(fan_in) ** 0.5
        return jax.random.uniform(k_, shape, jnp.float32, -bound, bound)

    conv1_w = uinit(keys[0], (32, c, 8, 8), c * 64)
    conv1_b = uinit(keys[1], (32,), c * 64)
    conv2_w = uinit(keys[2], (64, 32, 4, 4), 32 * 16)
    conv2_b = uinit(keys[3], (64,), 32 * 16)
    conv3_w = uinit(keys[4], (64, 64, 3, 3), 64 * 9)
    conv3_b = uinit(keys[5], (64,), 64 * 9)
    fc1_w = uinit(keys[6], (512, fc_in), fc_in)
    fc1_b = uinit(keys[7], (512,), fc_in)
    fc2_w = uinit(keys[8], (output_space, 512), 512)
    fc2_b = uinit(keys[9], (output_space,), 512)

    bf = jnp.bfloat16
    params = {
        # GEMM-ready bf16 weights (torch layouts folded once, at init).
        "w1m": conv1_w.reshape(32, c * 64).astype(bf),
        "b1": conv1_b.reshape(32, 1),
        "w2m": conv2_w.reshape(64, 32 * 16).astype(bf),
        "b2": conv2_b.reshape(64, 1),
        "w3t": jnp.transpose(conv3_w, (2, 3, 0, 1)).reshape(9, 64, 64).astype(bf),  # tap-major
        "w3m": conv3_w.reshape(64, 64 * 9).astype(bf),                               # fallback path
        "b3": conv3_b.reshape(64, 1),
        "fc1_w": fc1_w.astype(bf),
        "fc1_b": fc1_b.reshape(512, 1),
        "fc2_w": fc2_w.astype(bf),
        "fc2_b": fc2_b.reshape(output_space, 1),
    }
    return params


def qnetwork_forward(params, x):
    """x: (N, C, H, W) f32 -> q: (N, output_space) f32."""
    n = x.shape[0]
    # NCHW -> (C, H, W, N) channel-major / batch-minor, cast to bf16 ONCE
    # before any patch materialization.
    xb = jnp.transpose(x, (1, 2, 3, 0)).astype(jnp.bfloat16)

    # conv1 (k=8, s=4): tiled lane-dense GEMM kernel.
    p1, o1h, o1w = _im2col_chwn(xb, 8, 8, 4)
    a1 = conv_gemm_t(params["w1m"], p1, params["b1"], apply_relu=True)
    a1 = a1.reshape(32, o1h, o1w, n)                 # free reshape, stays channel-major

    # conv2 patches (small: ~4x conv1-output bytes, bf16).
    p2, o2h, o2w = _im2col_chwn(a1, 4, 4, 2)
    o3h, o3w = o2h - 2, o2w - 2

    if o3h == 1 and o3w == 1:
        # Fused conv2+conv3+flatten+fc1+ReLU+fc2 in ONE pallas_call.
        qT = fused_tail(p2, params, n=n, w2_dim=o2w)                 # (O, N) f32
    else:
        # General tail (e.g. 84x84 inputs): per-layer GEMMs, flatten is a free
        # reshape thanks to the batch-minor column order.
        a2 = conv_gemm_t(params["w2m"], p2, params["b2"], apply_relu=True)
        a2 = a2.reshape(64, o2h, o2w, n)
        p3, _, _ = _im2col_chwn(a2, 3, 3, 1)
        a3 = conv_gemm_t(params["w3m"], p3, params["b3"], apply_relu=True)
        flat = a3.reshape(64 * o3h * o3w, n)         # == torch .view(N, fc_in), transposed
        hT = conv_gemm_t(params["fc1_w"], flat, params["fc1_b"], apply_relu=True)
        qT = conv_gemm_t(params["fc2_w"], hT, params["fc2_b"],
                         apply_relu=False, out_dtype=jnp.float32)

    return jnp.transpose(qT)                         # (N, O) f32; tiny


if __name__ == "__main__":
    # Smallest spatial size the conv stack supports: 36x36 -> conv3 out 1x1.
    batch = 2
    input_shape = (4, 36, 36)
    output_space = 6

    key = jax.random.PRNGKey(0)
    pkey, xkey = jax.random.split(key)
    params = init_qnetwork_params(pkey, input_shape, output_space)
    x = jax.random.normal(xkey, (batch,) + input_shape, dtype=jnp.float32)

    fwd = jax.jit(qnetwork_forward)
    q = fwd(params, x)
    jax.block_until_ready(q)
    assert q.shape == (batch, output_space), q.shape
    print("KERNEL_OK")
</pallas_src>

<mosaic_0001>
module attributes {stable_mosaic.version = 11 : i64} {
  func.func @_gemm_t_kernel(%arg0: i32, %arg1: memref<32x256xbf16, #tpu.memory_space<vmem>>, %arg2: memref<256x128xbf16, #tpu.memory_space<vmem>>, %arg3: memref<32x1xf32, #tpu.memory_space<vmem>>, %arg4: memref<32x128xbf16, #tpu.memory_space<vmem>>) attributes {dimension_semantics = [#tpu.dimension_semantics<parallel>], iteration_bounds = array<i64: 1>, scalar_prefetch = 0 : i64, scratch_operands = 0 : i64, tpu.core_type = #tpu.core_type<tc>, window_params = [{pipeline_mode = #tpu.pipeline_mode<synchronous>, transform_indices = @transform_0, window_bounds = array<i64: 32, 256>}, {transform_indices = @transform_1, window_bounds = array<i64: 256, 128>}, {pipeline_mode = #tpu.pipeline_mode<synchronous>, transform_indices = @transform_2, window_bounds = array<i64: 32, 1>}, {transform_indices = @transform_3, window_bounds = array<i64: 32, 128>}]} {
    %c0 = arith.constant 0 : index
    %c0_0 = arith.constant 0 : index
    %0 = vector.load %arg1[%c0, %c0_0] : memref<32x256xbf16, #tpu.memory_space<vmem>>, vector<32x256xbf16>
    %c0_1 = arith.constant 0 : index
    %c0_2 = arith.constant 0 : index
    %1 = vector.load %arg2[%c0_1, %c0_2] : memref<256x128xbf16, #tpu.memory_space<vmem>>, vector<256x128xbf16>
    %cst = arith.constant dense<0.000000e+00> : vector<32x128xf32>
    %2 = tpu.matmul %0, %1, %cst {dimension_numbers = #tpu.dot_dimension_numbers<[1], [0], [0], [1], [0, 0, 1, 1], [], []>} : vector<32x256xbf16>, vector<256x128xbf16>, vector<32x128xf32> -> vector<32x128xf32>
    %c0_3 = arith.constant 0 : index
    %c0_4 = arith.constant 0 : index
    %3 = vector.load %arg3[%c0_3, %c0_4] : memref<32x1xf32, #tpu.memory_space<vmem>>, vector<32x1xf32>
    %4 = vector.broadcast %3 : vector<32x1xf32> to vector<32x128xf32>
    %5 = arith.addf %2, %4 : vector<32x128xf32>
    %cst_5 = arith.constant 0.000000e+00 : f32
    %6 = vector.broadcast %cst_5 : f32 to vector<32x128xf32>
    %7 = arith.maximumf %5, %6 : vector<32x128xf32>
    %8 = arith.truncf %7 : vector<32x128xf32> to vector<32x128xbf16>
    %c0_6 = arith.constant 0 : index
    %c0_7 = arith.constant 0 : index
    %9 = vector.load %arg4[%c0_6, %c0_7] : memref<32x128xbf16, #tpu.memory_space<vmem>>, vector<32x128xbf16>
    tpu.vector_store %arg4[%c0_6, %c0_7], %8 {strides = array<i32>} : memref<32x128xbf16, #tpu.memory_space<vmem>>, vector<32x128xbf16>,
    return
  }
  func.func @transform_0(%arg0: i32) -> (i32, i32) {
    %c0_i32 = arith.constant 0 : i32
    %c0_i32_0 = arith.constant 0 : i32
    %c0_i32_1 = arith.constant 0 : i32
    return %c0_i32, %c0_i32_0 : i32, i32
  }
  func.func @transform_1(%arg0: i32) -> (i32, i32) {
    %c0_i32 = arith.constant 0 : i32
    %c0_i32_0 = arith.constant 0 : i32
    return %c0_i32, %arg0 : i32, i32
  }
  func.func @transform_2(%arg0: i32) -> (i32, i32) {
    %c0_i32 = arith.constant 0 : i32
    %c0_i32_0 = arith.constant 0 : i32
    %c0_i32_1 = arith.constant 0 : i32
    return %c0_i32, %c0_i32_0 : i32, i32
  }
  func.func @transform_3(%arg0: i32) -> (i32, i32) {
    %c0_i32 = arith.constant 0 : i32
    %c0_i32_0 = arith.constant 0 : i32
    return %c0_i32, %arg0 : i32, i32
  }
}

module attributes {stable_mosaic.version = 11 : i64} {
  func.func @_tail_kernel(%arg0: memref<512x18xbf16, #tpu.memory_space<vmem>>, %arg1: memref<64x512xbf16, #tpu.memory_space<vmem>>, %arg2: memref<64x1xf32, #tpu.memory_space<vmem>>, %arg3: memref<9x64x64xbf16, #tpu.memory_space<vmem>>, %arg4: memref<64x1xf32, #tpu.memory_space<vmem>>, %arg5: memref<512x64xbf16, #tpu.memory_space<vmem>>, %arg6: memref<512x1xf32, #tpu.memory_space<vmem>>, %arg7: memref<6x512xbf16, #tpu.memory_space<vmem>>, %arg8: memref<6x1xf32, #tpu.memory_space<vmem>>, %arg9: memref<6x2xf32, #tpu.memory_space<vmem>>) attributes {dimension_semantics = [], scalar_prefetch = 0 : i64, scratch_operands = 0 : i64, tpu.core_type = #tpu.core_type<tc>} {
    %c0 = arith.constant 0 : index
    %c0_0 = arith.constant 0 : index
    %0 = vector.load %arg1[%c0, %c0_0] : memref<64x512xbf16, #tpu.memory_space<vmem>>, vector<64x512xbf16>
    %c0_1 = arith.constant 0 : index
    %c0_2 = arith.constant 0 : index
    %1 = vector.load %arg0[%c0_1, %c0_2] : memref<512x18xbf16, #tpu.memory_space<vmem>>, vector<512x18xbf16>
    %cst = arith.constant dense<0.000000e+00> : vector<64x18xf32>
    %2 = tpu.matmul %0, %1, %cst {dimension_numbers = #tpu.dot_dimension_numbers<[1], [0], [0], [1], [0, 0, 1, 1], [], []>} : vector<64x512xbf16>, vector<512x18xbf16>, vector<64x18xf32> -> vector<64x18xf32>
    %c0_3 = arith.constant 0 : index
    %c0_4 = arith.constant 0 : index
    %3 = vector.load %arg2[%c0_3, %c0_4] : memref<64x1xf32, #tpu.memory_space<vmem>>, vector<64x1xf32>
    %4 = vector.broadcast %3 : vector<64x1xf32> to vector<64x18xf32>
    %5 = arith.addf %2, %4 : vector<64x18xf32>
    %cst_5 = arith.constant 0.000000e+00 : f32
    %6 = vector.broadcast %cst_5 : f32 to vector<64x18xf32>
    %7 = arith.maximumf %5, %6 : vector<64x18xf32>
    %8 = arith.truncf %7 : vector<64x18xf32> to vector<64x18xbf16>
    %cst_6 = arith.constant 0.000000e+00 : f32
    %9 = vector.broadcast %cst_6 : f32 to vector<64x2xf32>
    %c0_7 = arith.constant 0 : index
    %c0_8 = arith.constant 0 : index
    %c0_9 = arith.constant 0 : index
    %10 = vector.load %arg3[%c0_7, %c0_8, %c0_9] : memref<9x64x64xbf16, #tpu.memory_space<vmem>>, vector<1x64x64xbf16>
    %11 = vector.shape_cast %10 : vector<1x64x64xbf16> to vector<64x64xbf16>
    %12 = vector.extract_strided_slice %8 {offsets = [0, 0], sizes = [64, 2], strides = [1, 1]} : vector<64x18xbf16> to vector<64x2xbf16>
    %cst_10 = arith.constant dense<0.000000e+00> : vector<64x2xf32>
    %13 = tpu.matmul %11, %12, %cst_10 {dimension_numbers = #tpu.dot_dimension_numbers<[1], [0], [0], [1], [0, 0, 1, 1], [], []>} : vector<64x64xbf16>, vector<64x2xbf16>, vector<64x2xf32> -> vector<64x2xf32>
    %14 = arith.addf %9, %13 : vector<64x2xf32>
    %c1 = arith.constant 1 : index
    %c0_11 = arith.constant 0 : index
    %c0_12 = arith.constant 0 : index
    %15 = vector.load %arg3[%c1, %c0_11, %c0_12] : memref<9x64x64xbf16, #tpu.memory_space<vmem>>, vector<1x64x64xbf16>
    %16 = vector.shape_cast %15 : vector<1x64x64xbf16> to vector<64x64xbf16>
    %17 = vector.extract_strided_slice %8 {offsets = [0, 2], sizes = [64, 2], strides = [1, 1]} : vector<64x18xbf16> to vector<64x2xbf16>
    %cst_13 = arith.constant dense<0.000000e+00> : vector<64x2xf32>
    %18 = tpu.matmul %16, %17, %cst_13 {dimension_numbers = #tpu.dot_dimension_numbers<[1], [0], [0], [1], [0, 0, 1, 1], [], []>} : vector<64x64xbf16>, vector<64x2xbf16>, vector<64x2xf32> -> vector<64x2xf32>
    %19 = arith.addf %14, %18 : vector<64x2xf32>
    %c2 = arith.constant 2 : index
    %c0_14 = arith.constant 0 : index
    %c0_15 = arith.constant 0 : index
    %20 = vector.load %arg3[%c2, %c0_14, %c0_15] : memref<9x64x64xbf16, #tpu.memory_space<vmem>>, vector<1x64x64xbf16>
    %21 = vector.shape_cast %20 : vector<1x64x64xbf16> to vector<64x64xbf16>
    %22 = vector.extract_strided_slice %8 {offsets = [0, 4], sizes = [64, 2], strides = [1, 1]} : vector<64x18xbf16> to vector<64x2xbf16>
    %cst_16 = arith.constant dense<0.000000e+00> : vector<64x2xf32>
    %23 = tpu.matmul %21, %22, %cst_16 {dimension_numbers = #tpu.dot_dimension_numbers<[1], [0], [0], [1], [0, 0, 1, 1], [], []>} : vector<64x64xbf16>, vector<64x2xbf16>, vector<64x2xf32> -> vector<64x2xf32>
    %24 = arith.addf %19, %23 : vector<64x2xf32>
    %c3 = arith.constant 3 : index
    %c0_17 = arith.constant 0 : index
    %c0_18 = arith.constant 0 : index
    %25 = vector.load %arg3[%c3, %c0_17, %c0_18] : memref<9x64x64xbf16, #tpu.memory_space<vmem>>, vector<1x64x64xbf16>
    %26 = vector.shape_cast %25 : vector<1x64x64xbf16> to vector<64x64xbf16>
    %27 = vector.extract_strided_slice %8 {offsets = [0, 6], sizes = [64, 2], strides = [1, 1]} : vector<64x18xbf16> to vector<64x2xbf16>
    %cst_19 = arith.constant dense<0.000000e+00> : vector<64x2xf32>
    %28 = tpu.matmul %26, %27, %cst_19 {dimension_numbers = #tpu.dot_dimension_numbers<[1], [0], [0], [1], [0, 0, 1, 1], [], []>} : vector<64x64xbf16>, vector<64x2xbf16>, vector<64x2xf32> -> vector<64x2xf32>
    %29 = arith.addf %24, %28 : vector<64x2xf32>
    %c4 = arith.constant 4 : index
    %c0_20 = arith.constant 0 : index
    %c0_21 = arith.constant 0 : index
    %30 = vector.load %arg3[%c4, %c0_20, %c0_21] : memref<9x64x64xbf16, #tpu.memory_space<vmem>>, vector<1x64x64xbf16>
    %31 = vector.shape_cast %30 : vector<1x64x64xbf16> to vector<64x64xbf16>
    %32 = vector.extract_strided_slice %8 {offsets = [0, 8], sizes = [64, 2], strides = [1, 1]} : vector<64x18xbf16> to vector<64x2xbf16>
    %cst_22 = arith.constant dense<0.000000e+00> : vector<64x2xf32>
    %33 = tpu.matmul %31, %32, %cst_22 {dimension_numbers = #tpu.dot_dimension_numbers<[1], [0], [0], [1], [0, 0, 1, 1], [], []>} : vector<64x64xbf16>, vector<64x2xbf16>, vector<64x2xf32> -> vector<64x2xf32>
    %34 = arith.addf %29, %33 : vector<64x2xf32>
    %c5 = arith.constant 5 : index
    %c0_23 = arith.constant 0 : index
    %c0_24 = arith.constant 0 : index
    %35 = vector.load %arg3[%c5, %c0_23, %c0_24] : memref<9x64x64xbf16, #tpu.memory_space<vmem>>, vector<1x64x64xbf16>
    %36 = vector.shape_cast %35 : vector<1x64x64xbf16> to vector<64x64xbf16>
    %37 = vector.extract_strided_slice %8 {offsets = [0, 10], sizes = [64, 2], strides = [1, 1]} : vector<64x18xbf16> to vector<64x2xbf16>
    %cst_25 = arith.constant dense<0.000000e+00> : vector<64x2xf32>
    %38 = tpu.matmul %36, %37, %cst_25 {dimension_numbers = #tpu.dot_dimension_numbers<[1], [0], [0], [1], [0, 0, 1, 1], [], []>} : vector<64x64xbf16>, vector<64x2xbf16>, vector<64x2xf32> -> vector<64x2xf32>
    %39 = arith.addf %34, %38 : vector<64x2xf32>
    %c6 = arith.constant 6 : index
    %c0_26 = arith.constant 0 : index
    %c0_27 = arith.constant 0 : index
    %40 = vector.load %arg3[%c6, %c0_26, %c0_27] : memref<9x64x64xbf16, #tpu.memory_space<vmem>>, vector<1x64x64xbf16>
    %41 = vector.shape_cast %40 : vector<1x64x64xbf16> to vector<64x64xbf16>
    %42 = vector.extract_strided_slice %8 {offsets = [0, 12], sizes = [64, 2], strides = [1, 1]} : vector<64x18xbf16> to vector<64x2xbf16>
    %cst_28 = arith.constant dense<0.000000e+00> : vector<64x2xf32>
    %43 = tpu.matmul %41, %42, %cst_28 {dimension_numbers = #tpu.dot_dimension_numbers<[1], [0], [0], [1], [0, 0, 1, 1], [], []>} : vector<64x64xbf16>, vector<64x2xbf16>, vector<64x2xf32> -> vector<64x2xf32>
    %44 = arith.addf %39, %43 : vector<64x2xf32>
    %c7 = arith.constant 7 : index
    %c0_29 = arith.constant 0 : index
    %c0_30 = arith.constant 0 : index
    %45 = vector.load %arg3[%c7, %c0_29, %c0_30] : memref<9x64x64xbf16, #tpu.memory_space<vmem>>, vector<1x64x64xbf16>
    %46 = vector.shape_cast %45 : vector<1x64x64xbf16> to vector<64x64xbf16>
    %47 = vector.extract_strided_slice %8 {offsets = [0, 14], sizes = [64, 2], strides = [1, 1]} : vector<64x18xbf16> to vector<64x2xbf16>
    %cst_31 = arith.constant dense<0.000000e+00> : vector<64x2xf32>
    %48 = tpu.matmul %46, %47, %cst_31 {dimension_numbers = #tpu.dot_dimension_numbers<[1], [0], [0], [1], [0, 0, 1, 1], [], []>} : vector<64x64xbf16>, vector<64x2xbf16>, vector<64x2xf32> -> vector<64x2xf32>
    %49 = arith.addf %44, %48 : vector<64x2xf32>
    %c8 = arith.constant 8 : index
    %c0_32 = arith.constant 0 : index
    %c0_33 = arith.constant 0 : index
    %50 = vector.load %arg3[%c8, %c0_32, %c0_33] : memref<9x64x64xbf16, #tpu.memory_space<vmem>>, vector<1x64x64xbf16>
    %51 = vector.shape_cast %50 : vector<1x64x64xbf16> to vector<64x64xbf16>
    %52 = vector.extract_strided_slice %8 {offsets = [0, 16], sizes = [64, 2], strides = [1, 1]} : vector<64x18xbf16> to vector<64x2xbf16>
    %cst_34 = arith.constant dense<0.000000e+00> : vector<64x2xf32>
    %53 = tpu.matmul %51, %52, %cst_34 {dimension_numbers = #tpu.dot_dimension_numbers<[1], [0], [0], [1], [0, 0, 1, 1], [], []>} : vector<64x64xbf16>, vector<64x2xbf16>, vector<64x2xf32> -> vector<64x2xf32>
    %54 = arith.addf %49, %53 : vector<64x2xf32>
    %c0_35 = arith.constant 0 : index
    %c0_36 = arith.constant 0 : index
    %55 = vector.load %arg4[%c0_35, %c0_36] : memref<64x1xf32, #tpu.memory_space<vmem>>, vector<64x1xf32>
    %56 = vector.broadcast %55 : vector<64x1xf32> to vector<64x2xf32>
    %57 = arith.addf %54, %56 : vector<64x2xf32>
    %cst_37 = arith.constant 0.000000e+00 : f32
    %58 = vector.broadcast %cst_37 : f32 to vector<64x2xf32>
    %59 = arith.maximumf %57, %58 : vector<64x2xf32>
    %60 = arith.truncf %59 : vector<64x2xf32> to vector<64x2xbf16>
    %c0_38 = arith.constant 0 : index
    %c0_39 = arith.constant 0 : index
    %61 = vector.load %arg5[%c0_38, %c0_39] : memref<512x64xbf16, #tpu.memory_space<vmem>>, vector<512x64xbf16>
    %cst_40 = arith.constant dense<0.000000e+00> : vector<512x2xf32>
    %62 = tpu.matmul %61, %60, %cst_40 {dimension_numbers = #tpu.dot_dimension_numbers<[1], [0], [0], [1], [0, 0, 1, 1], [], []>} : vector<512x64xbf16>, vector<64x2xbf16>, vector<512x2xf32> -> vector<512x2xf32>
    %c0_41 = arith.constant 0 : index
    %c0_42 = arith.constant 0 : index
    %63 = vector.load %arg6[%c0_41, %c0_42] : memref<512x1xf32, #tpu.memory_space<vmem>>, vector<512x1xf32>
    %64 = vector.broadcast %63 : vector<512x1xf32> to vector<512x2xf32>
    %65 = arith.addf %62, %64 : vector<512x2xf32>
    %cst_43 = arith.constant 0.000000e+00 : f32
    %66 = vector.broadcast %cst_43 : f32 to vector<512x2xf32>
    %67 = arith.maximumf %65, %66 : vector<512x2xf32>
    %68 = arith.truncf %67 : vector<512x2xf32> to vector<512x2xbf16>
    %c0_44 = arith.constant 0 : index
    %c0_45 = arith.constant 0 : index
    %69 = vector.load %arg7[%c0_44, %c0_45] : memref<6x512xbf16, #tpu.memory_space<vmem>>, vector<6x512xbf16>
    %cst_46 = arith.constant dense<0.000000e+00> : vector<6x2xf32>
    %70 = tpu.matmul %69, %68, %cst_46 {dimension_numbers = #tpu.dot_dimension_numbers<[1], [0], [0], [1], [0, 0, 1, 1], [], []>} : vector<6x512xbf16>, vector<512x2xbf16>, vector<6x2xf32> -> vector<6x2xf32>
    %c0_47 = arith.constant 0 : index
    %c0_48 = arith.constant 0 : index
    %71 = vector.load %arg8[%c0_47, %c0_48] : memref<6x1xf32, #tpu.memory_space<vmem>>, vector<6x1xf32>
    %72 = vector.broadcast %71 : vector<6x1xf32> to vector<6x2xf32>
    %73 = arith.addf %70, %72 : vector<6x2xf32>
    %c0_49 = arith.constant 0 : index
    %c0_50 = arith.constant 0 : index
    %74 = vector.load %arg9[%c0_49, %c0_50] : memref<6x2xf32, #tpu.memory_space<vmem>>, vector<6x2xf32>
    tpu.vector_store %arg9[%c0_49, %c0_50], %73 {strides = array<i32>} : memref<6x2xf32, #tpu.memory_space<vmem>>, vector<6x2xf32>,
    return
  }
}

</mosaic_0001>

<llo_original>
// kernel: qnetwork_forward.2
$region0: #{qnetwork_forward.2}
  #allocation0 [shape = 'u32[]', space=smem, size = 0x4, offset = 0x4, fixed_abs, tag = 'smem constant byte address 0x4 - core index']
  #allocation1 [shape = 'u32[144,128]{1,0:T(1,128)}', space=vmem, size = 0x12000, scoped, tag = 'internal scratch']
  %s0 = inlined_call_operand.vmem [shape: bf16[32,256], index: 0, kind: input, shape index: {}]
  %s1 = inlined_call_operand.vmem [shape: bf16[256,128], index: 1, kind: input, shape index: {}]
  %s2 = inlined_call_operand.vmem [shape: f32[32,1], index: 2, kind: input, shape index: {}]
  %s3 = inlined_call_operand.vmem [shape: bf16[32,128], index: 3, kind: output, shape index: {}]
  %s4 = sld [smem:[#allocation0]]
  $region22: #{qnetwork_forward.2} parent=0
    _
  %s6 = ssub.s32 1, %s4
  %s7 = scalar_select 0, %s6, %s4
  // Predicated region
  $region2: #{qnetwork_forward.2} parent=0 // pred_check
    _
  $region3: #{qnetwork_forward.2} parent=0 // pred_check_branch
    %9 = sbr.rel (0) target = $region5
  $region4: #{qnetwork_forward.2} parent=0 // pred_region
    _
  $region5: #{qnetwork_forward.2} parent=0 // pred_fallthru
    _
  // Predicated region
  $region6: #{qnetwork_forward.2} parent=0 // pred_check
    _
  $region7: #{qnetwork_forward.2} parent=0 // pred_check_branch
    %11 = sbr.rel (0) target = $region9
  $region8: #{qnetwork_forward.2} parent=0 // pred_region
    _
  $region9: #{qnetwork_forward.2} parent=0 // pred_fallthru
    _
  // Predicated region
  $region10: #{qnetwork_forward.2} parent=0 // pred_check
    _
  $region11: #{qnetwork_forward.2} parent=0 // pred_check_branch
    %13 = sbr.rel (0) target = $region13
  $region12: #{qnetwork_forward.2} parent=0 // pred_region
    _
  $region13: #{qnetwork_forward.2} parent=0 // pred_fallthru
    _
  %v15 = vld [vmem:[%s0] sm:$0xff]
  %v16 = vld [vmem:[%s0 + $0x8] sm:$0xff]
  %v17 = vld [vmem:[%s0 + $0x10] sm:$0xff]
  %v18 = vld [vmem:[%s0 + $0x18] sm:$0xff]
  %v19 = vld [vmem:[%s1] sm:$0xf]
  %v20 = vld [vmem:[%s1 + $0x4] sm:$0xf]
  %v21 = vld [vmem:[%s1 + $0x8] sm:$0xf]
  %v22 = vld [vmem:[%s1 + $0xc] sm:$0xf]
  %v23 = vld [vmem:[%s1 + $0x10] sm:$0xf]
  %v24 = vld [vmem:[%s1 + $0x14] sm:$0xf]
  %v25 = vld [vmem:[%s1 + $0x18] sm:$0xf]
  %v26 = vld [vmem:[%s1 + $0x1c] sm:$0xf]
  %v27 = vld [vmem:[%s1 + $0x20] sm:$0xf]
  %v28 = vld [vmem:[%s1 + $0x24] sm:$0xf]
  %v29 = vld [vmem:[%s1 + $0x28] sm:$0xf]
  %v30 = vld [vmem:[%s1 + $0x2c] sm:$0xf]
  %v31 = vld [vmem:[%s1 + $0x30] sm:$0xf]
  %v32 = vld [vmem:[%s1 + $0x34] sm:$0xf]
  %v33 = vld [vmem:[%s1 + $0x38] sm:$0xf]
  %v34 = vld [vmem:[%s1 + $0x3c] sm:$0xf]
  %v35 = vld [vmem:[%s1 + $0x40] sm:$0xf]
  %v36 = vld [vmem:[%s1 + $0x44] sm:$0xf]
  %v37 = vld [vmem:[%s1 + $0x48] sm:$0xf]
  %v38 = vld [vmem:[%s1 + $0x4c] sm:$0xf]
  %v39 = vld [vmem:[%s1 + $0x50] sm:$0xf]
  %v40 = vld [vmem:[%s1 + $0x54] sm:$0xf]
  %v41 = vld [vmem:[%s1 + $0x58] sm:$0xf]
  %v42 = vld [vmem:[%s1 + $0x5c] sm:$0xf]
  %v43 = vld [vmem:[%s1 + $0x60] sm:$0xf]
  %v44 = vld [vmem:[%s1 + $0x64] sm:$0xf]
  %v45 = vld [vmem:[%s1 + $0x68] sm:$0xf]
  %v46 = vld [vmem:[%s1 + $0x6c] sm:$0xf]
  %v47 = vld [vmem:[%s1 + $0x70] sm:$0xf]
  %v48 = vld [vmem:[%s1 + $0x74] sm:$0xf]
  %v49 = vld [vmem:[%s1 + $0x78] sm:$0xf]
  %v50 = vld [vmem:[%s1 + $0x7c] sm:$0xf]
  %v51 = vld [vmem:[%s2] sm:$0xff]
  %v52 = vld [vmem:[%s2 + $0x8] sm:$0xff]
  %v53 = vld [vmem:[%s2 + $0x10] sm:$0xff]
  %v54 = vld [vmem:[%s2 + $0x18] sm:$0xff]
  %56 = vset.pattern.permute.xlu0 0
  %57 = vperm.xlu0 %56, %v51
  %v58 = vpop.permute.xlu0 %57
  %61 = vset.pattern.permute.xlu0 0
  %62 = vperm.xlu0 %61, %v52
  %v63 = vpop.permute.xlu0 %62
  %66 = vset.pattern.permute.xlu0 0
  %67 = vperm.xlu0 %66, %v53
  %v68 = vpop.permute.xlu0 %67
  %71 = vset.pattern.permute.xlu0 0
  %72 = vperm.xlu0 %71, %v54
  %v73 = vpop.permute.xlu0 %72
  %v79 = vunpack.c.l.b16 %v15
  %v80 = vunpack.c.h.b16 %v15
  %v81 = vunpack.c.l.b16 %v16
  %v82 = vunpack.c.h.b16 %v16
  %v83 = vunpack.c.l.b16 %v17
  %v84 = vunpack.c.h.b16 %v17
  %v85 = vunpack.c.l.b16 %v18
  %v86 = vunpack.c.h.b16 %v18
  %v87 = vpack.c.b16 %v81, %v79
  %v88 = vpack.c.b16 %v82, %v80
  %v89 = vpack.c.b16 %v85, %v83
  %v90 = vpack.c.b16 %v86, %v84
  %v127 = vunpack.c.l.b16 %v19
  %v128 = vunpack.c.l.b16 %v20
  %v129 = vunpack.c.l.b16 %v21
  %v130 = vunpack.c.l.b16 %v22
  %v131 = vunpack.c.l.b16 %v23
  %v132 = vunpack.c.l.b16 %v24
  %v133 = vunpack.c.l.b16 %v25
  %v134 = vunpack.c.l.b16 %v26
  %v135 = vunpack.c.l.b16 %v27
  %v136 = vunpack.c.l.b16 %v28
  %v137 = vunpack.c.l.b16 %v29
  %v138 = vunpack.c.l.b16 %v30
  %v139 = vunpack.c.l.b16 %v31
  %v140 = vunpack.c.l.b16 %v32
  %v141 = vunpack.c.l.b16 %v33
  %v142 = vunpack.c.l.b16 %v34
  %v143 = vunpack.c.l.b16 %v35
  %v144 = vunpack.c.l.b16 %v36
  %v145 = vunpack.c.l.b16 %v37
  %v146 = vunpack.c.l.b16 %v38
  %v147 = vunpack.c.l.b16 %v39
  %v148 = vunpack.c.l.b16 %v40
  %v149 = vunpack.c.l.b16 %v41
  %v150 = vunpack.c.l.b16 %v42
  %v151 = vunpack.c.l.b16 %v43
  %v152 = vunpack.c.l.b16 %v44
  %v153 = vunpack.c.l.b16 %v45
  %v154 = vunpack.c.l.b16 %v46
  %v155 = vunpack.c.l.b16 %v47
  %v156 = vunpack.c.l.b16 %v48
  %v157 = vunpack.c.l.b16 %v49
  %v158 = vunpack.c.l.b16 %v50
  %v159 = vpack.c.b16 %v128, %v127
  %v160 = vpack.c.b16 %v130, %v129
  %v161 = vpack.c.b16 %v132, %v131
  %v162 = vpack.c.b16 %v134, %v133
  %v163 = vpack.c.b16 %v136, %v135
  %v164 = vpack.c.b16 %v138, %v137
  %v165 = vpack.c.b16 %v140, %v139
  %v166 = vpack.c.b16 %v142, %v141
  %v167 = vpack.c.b16 %v144, %v143
  %v168 = vpack.c.b16 %v146, %v145
  %v169 = vpack.c.b16 %v148, %v147
  %v170 = vpack.c.b16 %v150, %v149
  %v171 = vpack.c.b16 %v152, %v151
  %v172 = vpack.c.b16 %v154, %v153
  %v173 = vpack.c.b16 %v156, %v155
  %v174 = vpack.c.b16 %v158, %v157
  %191 = vmatprep.subr.bf16.mxu0 0
  %192 = vmatpush1.bf16.msra.mxu0 %v159
  %193 = vmatprep.subr.bf16.mxu0 0
  %194 = vmatpush1.bf16.msra.mxu0 %v160
  %195 = vmatprep.subr.bf16.mxu0 0
  %196 = vmatpush1.bf16.msra.mxu0 %v161
  %197 = vmatprep.subr.bf16.mxu0 0
  %198 = vmatpush1.bf16.msra.mxu0 %v162
  %199 = vmatprep.subr.bf16.mxu0 0
  %200 = vmatpush1.bf16.msra.mxu0 %v163
  %201 = vmatprep.subr.bf16.mxu0 0
  %202 = vmatpush1.bf16.msra.mxu0 %v164
  %203 = vmatprep.subr.bf16.mxu0 0
  %204 = vmatpush1.bf16.msra.mxu0 %v165
  %205 = vmatprep.subr.bf16.mxu0 0
  %206 = vmatpush1.bf16.msra.mxu0 %v166
  %207 = vmatprep.subr.bf16.mxu0 0
  %208 = vmatpush1.bf16.msra.mxu0 %v167
  %209 = vmatprep.subr.bf16.mxu0 0
  %210 = vmatpush1.bf16.msra.mxu0 %v168
  %211 = vmatprep.subr.bf16.mxu0 0
  %212 = vmatpush1.bf16.msra.mxu0 %v169
  %213 = vmatprep.subr.bf16.mxu0 0
  %214 = vmatpush1.bf16.msra.mxu0 %v170
  %215 = vmatprep.subr.bf16.mxu0 0
  %216 = vmatpush1.bf16.msra.mxu0 %v171
  %217 = vmatprep.subr.bf16.mxu0 0
  %218 = vmatpush1.bf16.msra.mxu0 %v172
  %219 = vmatprep.subr.bf16.mxu0 0
  %220 = vmatpush1.bf16.msra.mxu0 %v173
  %221 = vmatprep.subr.bf16.mxu0 0
  %222 = vmatpush1.bf16.msra.mxu0 %v174
  %223 = vmatprep.mubr.bf16.mxu0 %v88
  %224 = vmatmul.mubr.bf16.gmra.mrb[0].mxu0 %v87
  %v225 = vpop.f32.mrb[0].mxu0
  %v226 = vadd.f32 %v58, %v225
  %v227 = vpop.f32.mrb[0].mxu0
  %v228 = vpop.f32.mrb[0].mxu0
  %v229 = vadd.f32 %v63, %v228
  %v230 = vpop.f32.mrb[0].mxu0
  %231 = vmatprep.mubr.bf16.mxu0 %v90
  %232 = vmatmul.mubr.bf16.gmra.mrb[0].mxu0 %v89
  %v233 = vpop.f32.mrb[0].mxu0
  %v234 = vadd.f32 %v68, %v233
  %v235 = vpop.f32.mrb[0].mxu0
  %v236 = vpop.f32.mrb[0].mxu0
  %v237 = vadd.f32 %v73, %v236
  %v238 = vpop.f32.mrb[0].mxu0
  %239 = vdwg.mxu0
  %v240 = vmax.f32 %v226, 0.0
  %v241 = vmax.f32 %v229, 0.0
  %v242 = vmax.f32 %v234, 0.0
  %v243 = vmax.f32 %v237, 0.0
  %v244 = vpack.c.bf16 %v241, %v240
  %v245 = vpack.c.bf16 %v243, %v242
  %v248 = vunpack.c.l.b16 %v244
  %v249 = vunpack.c.h.b16 %v244
  %v250 = vunpack.c.l.b16 %v245
  %v251 = vunpack.c.h.b16 %v245
  %v252 = vpack.c.b16 %v248, %v248
  %v253 = vpack.c.b16 %v249, %v249
  %v254 = vpack.c.b16 %v250, %v250
  %v255 = vpack.c.b16 %v251, %v251
  %260 = vst [vmem:[%s3] sm:$0xf] %v252
  %261 = vst [vmem:[%s3 + $0x4] sm:$0xf] %v253
  %262 = vst [vmem:[%s3 + $0x8] sm:$0xf] %v254
  %263 = vst [vmem:[%s3 + $0xc] sm:$0xf] %v255
  // Predicated region
  $region14: #{qnetwork_forward.2} parent=0 // pred_check
    _
  $region15: #{qnetwork_forward.2} parent=0 // pred_check_branch
    %265 = sbr.rel (0) target = $region17
  $region16: #{qnetwork_forward.2} parent=0 // pred_region
    _
  $region17: #{qnetwork_forward.2} parent=0 // pred_fallthru
    _
  // Predicated region
  $region18: #{qnetwork_forward.2} parent=0 // pred_check
    _
  $region19: #{qnetwork_forward.2} parent=0 // pred_check_branch
    %267 = sbr.rel (0) target = $region21
  $region20: #{qnetwork_forward.2} parent=0 // pred_region
    _
  $region21: #{qnetwork_forward.2} parent=0 // pred_fallthru
    _

// kernel: qnetwork_forward.3
$region0: #{qnetwork_forward.3}
  #allocation0 [shape = 'u32[]', space=smem, size = 0x4, offset = 0x4, fixed_abs, tag = 'smem constant byte address 0x4 - core index']
  #allocation1 [shape = 'u32[144,128]{1,0:T(1,128)}', space=vmem, size = 0x12000, scoped, tag = 'internal scratch']
  %s0 = inlined_call_operand.vmem [shape: bf16[512,18], index: 0, kind: input, shape index: {}]
  %s1 = inlined_call_operand.vmem [shape: bf16[64,512], index: 1, kind: input, shape index: {}]
  %s2 = inlined_call_operand.vmem [shape: f32[64,1], index: 2, kind: input, shape index: {}]
  %s3 = inlined_call_operand.vmem [shape: bf16[9,64,64], index: 3, kind: input, shape index: {}]
  %s4 = inlined_call_operand.vmem [shape: f32[64,1], index: 4, kind: input, shape index: {}]
  %s5 = inlined_call_operand.vmem [shape: bf16[512,64], index: 5, kind: input, shape index: {}]
  %s6 = inlined_call_operand.vmem [shape: f32[512,1], index: 6, kind: input, shape index: {}]
  %s7 = inlined_call_operand.vmem [shape: bf16[6,512], index: 7, kind: input, shape index: {}]
  %s8 = inlined_call_operand.vmem [shape: f32[6,1], index: 8, kind: input, shape index: {}]
  %s9 = inlined_call_operand.vmem [shape: f32[6,2], index: 9, kind: output, shape index: {}]
  %s10 = sld [smem:[#allocation0]]
  $region46: #{qnetwork_forward.3} parent=0
    _
  %s12 = ssub.s32 1, %s10
  %s13 = scalar_select 0, %s12, %s10
  // Predicated region
  $region2: #{qnetwork_forward.3} parent=0 // pred_check
    _
  $region3: #{qnetwork_forward.3} parent=0 // pred_check_branch
    %15 = sbr.rel (0) target = $region5
  $region4: #{qnetwork_forward.3} parent=0 // pred_region
    _
  $region5: #{qnetwork_forward.3} parent=0 // pred_fallthru
    _
  // Predicated region
  $region6: #{qnetwork_forward.3} parent=0 // pred_check
    _
  $region7: #{qnetwork_forward.3} parent=0 // pred_check_branch
    %17 = sbr.rel (0) target = $region9
  $region8: #{qnetwork_forward.3} parent=0 // pred_region
    _
  $region9: #{qnetwork_forward.3} parent=0 // pred_fallthru
    _
  // Predicated region
  $region10: #{qnetwork_forward.3} parent=0 // pred_check
    _
  $region11: #{qnetwork_forward.3} parent=0 // pred_check_branch
    %19 = sbr.rel (0) target = $region13
  $region12: #{qnetwork_forward.3} parent=0 // pred_region
    _
  $region13: #{qnetwork_forward.3} parent=0 // pred_fallthru
    _
  // Predicated region
  $region14: #{qnetwork_forward.3} parent=0 // pred_check
    _
  $region15: #{qnetwork_forward.3} parent=0 // pred_check_branch
    %21 = sbr.rel (0) target = $region17
  $region16: #{qnetwork_forward.3} parent=0 // pred_region
    _
  $region17: #{qnetwork_forward.3} parent=0 // pred_fallthru
    _
  // Predicated region
  $region18: #{qnetwork_forward.3} parent=0 // pred_check
    _
  $region19: #{qnetwork_forward.3} parent=0 // pred_check_branch
    %23 = sbr.rel (0) target = $region21
  $region20: #{qnetwork_forward.3} parent=0 // pred_region
    _
  $region21: #{qnetwork_forward.3} parent=0 // pred_fallthru
    _
  // Predicated region
  $region22: #{qnetwork_forward.3} parent=0 // pred_check
    _
  $region23: #{qnetwork_forward.3} parent=0 // pred_check_branch
    %25 = sbr.rel (0) target = $region25
  $region24: #{qnetwork_forward.3} parent=0 // pred_region
    _
  $region25: #{qnetwork_forward.3} parent=0 // pred_fallthru
    _
  // Predicated region
  $region26: #{qnetwork_forward.3} parent=0 // pred_check
    _
  $region27: #{qnetwork_forward.3} parent=0 // pred_check_branch
    %27 = sbr.rel (0) target = $region29
  $region28: #{qnetwork_forward.3} parent=0 // pred_region
    _
  $region29: #{qnetwork_forward.3} parent=0 // pred_fallthru
    _
  // Predicated region
  $region30: #{qnetwork_forward.3} parent=0 // pred_check
    _
  $region31: #{qnetwork_forward.3} parent=0 // pred_check_branch
    %29 = sbr.rel (0) target = $region33
  $region32: #{qnetwork_forward.3} parent=0 // pred_region
    _
  $region33: #{qnetwork_forward.3} parent=0 // pred_fallthru
    _
  // Predicated region
  $region34: #{qnetwork_forward.3} parent=0 // pred_check
    _
  $region35: #{qnetwork_forward.3} parent=0 // pred_check_branch
    %31 = sbr.rel (0) target = $region37
  $region36: #{qnetwork_forward.3} parent=0 // pred_region
    _
  $region37: #{qnetwork_forward.3} parent=0 // pred_fallthru
    _
  %v33 = vld [vmem:[%s1] sm:$0xff]
  %v34 = vld [vmem:[%s1 + $0x8] sm:$0xff]
  %v35 = vld [vmem:[%s1 + $0x10] sm:$0xff]
  %v36 = vld [vmem:[%s1 + $0x18] sm:$0xff]
  %v37 = vld [vmem:[%s1 + $0x20] sm:$0xff]
  %v38 = vld [vmem:[%s1 + $0x28] sm:$0xff]
  %v39 = vld [vmem:[%s1 + $0x30] sm:$0xff]
  %v40 = vld [vmem:[%s1 + $0x38] sm:$0xff]
  %v41 = vld [vmem:[%s1 + $0x40] sm:$0xff]
  %v42 = vld [vmem:[%s1 + $0x48] sm:$0xff]
  %v43 = vld [vmem:[%s1 + $0x50] sm:$0xff]
  %v44 = vld [vmem:[%s1 + $0x58] sm:$0xff]
  %v45 = vld [vmem:[%s1 + $0x60] sm:$0xff]
  %v46 = vld [vmem:[%s1 + $0x68] sm:$0xff]
  %v47 = vld [vmem:[%s1 + $0x70] sm:$0xff]
  %v48 = vld [vmem:[%s1 + $0x78] sm:$0xff]
  %v49 = vld [vmem:[%s0] sm:$0xf]
  %v50 = vld [vmem:[%s0 + $0x4] sm:$0xf]
  %v51 = vld [vmem:[%s0 + $0x8] sm:$0xf]
  %v52 = vld [vmem:[%s0 + $0xc] sm:$0xf]
  %v53 = vld [vmem:[%s0 + $0x10] sm:$0xf]
  %v54 = vld [vmem:[%s0 + $0x14] sm:$0xf]
  %v55 = vld [vmem:[%s0 + $0x18] sm:$0xf]
  %v56 = vld [vmem:[%s0 + $0x1c] sm:$0xf]
  %v57 = vld [vmem:[%s0 + $0x20] sm:$0xf]
  %v58 = vld [vmem:[%s0 + $0x24] sm:$0xf]
  %v59 = vld [vmem:[%s0 + $0x28] sm:$0xf]
  %v60 = vld [vmem:[%s0 + $0x2c] sm:$0xf]
  %v61 = vld [vmem:[%s0 + $0x30] sm:$0xf]
  %v62 = vld [vmem:[%s0 + $0x34] sm:$0xf]
  %v63 = vld [vmem:[%s0 + $0x38] sm:$0xf]
  %v64 = vld [vmem:[%s0 + $0x3c] sm:$0xf]
  %v65 = vld [vmem:[%s0 + $0x40] sm:$0xf]
  %v66 = vld [vmem:[%s0 + $0x44] sm:$0xf]
  %v67 = vld [vmem:[%s0 + $0x48] sm:$0xf]
  %v68 = vld [vmem:[%s0 + $0x4c] sm:$0xf]
  %v69 = vld [vmem:[%s0 + $0x50] sm:$0xf]
  %v70 = vld [vmem:[%s0 + $0x54] sm:$0xf]
  %v71 = vld [vmem:[%s0 + $0x58] sm:$0xf]
  %v72 = vld [vmem:[%s0 + $0x5c] sm:$0xf]
  %v73 = vld [vmem:[%s0 + $0x60] sm:$0xf]
  %v74 = vld [vmem:[%s0 + $0x64] sm:$0xf]
  %v75 = vld [vmem:[%s0 + $0x68] sm:$0xf]
  %v76 = vld [vmem:[%s0 + $0x6c] sm:$0xf]
  %v77 = vld [vmem:[%s0 + $0x70] sm:$0xf]
  %v78 = vld [vmem:[%s0 + $0x74] sm:$0xf]
  %v79 = vld [vmem:[%s0 + $0x78] sm:$0xf]
  %v80 = vld [vmem:[%s0 + $0x7c] sm:$0xf]
  %v81 = vld [vmem:[%s0 + $0x80] sm:$0xf]
  %v82 = vld [vmem:[%s0 + $0x84] sm:$0xf]
  %v83 = vld [vmem:[%s0 + $0x88] sm:$0xf]
  %v84 = vld [vmem:[%s0 + $0x8c] sm:$0xf]
  %v85 = vld [vmem:[%s0 + $0x90] sm:$0xf]
  %v86 = vld [vmem:[%s0 + $0x94] sm:$0xf]
  %v87 = vld [vmem:[%s0 + $0x98] sm:$0xf]
  %v88 = vld [vmem:[%s0 + $0x9c] sm:$0xf]
  %v89 = vld [vmem:[%s0 + $0xa0] sm:$0xf]
  %v90 = vld [vmem:[%s0 + $0xa4] sm:$0xf]
  %v91 = vld [vmem:[%s0 + $0xa8] sm:$0xf]
  %v92 = vld [vmem:[%s0 + $0xac] sm:$0xf]
  %v93 = vld [vmem:[%s0 + $0xb0] sm:$0xf]
  %v94 = vld [vmem:[%s0 + $0xb4] sm:$0xf]
  %v95 = vld [vmem:[%s0 + $0xb8] sm:$0xf]
  %v96 = vld [vmem:[%s0 + $0xbc] sm:$0xf]
  %v97 = vld [vmem:[%s0 + $0xc0] sm:$0xf]
  %v98 = vld [vmem:[%s0 + $0xc4] sm:$0xf]
  %v99 = vld [vmem:[%s0 + $0xc8] sm:$0xf]
  %v100 = vld [vmem:[%s0 + $0xcc] sm:$0xf]
  %v101 = vld [vmem:[%s0 + $0xd0] sm:$0xf]
  %v102 = vld [vmem:[%s0 + $0xd4] sm:$0xf]
  %v103 = vld [vmem:[%s0 + $0xd8] sm:$0xf]
  %v104 = vld [vmem:[%s0 + $0xdc] sm:$0xf]
  %v105 = vld [vmem:[%s0 + $0xe0] sm:$0xf]
  %v106 = vld [vmem:[%s0 + $0xe4] sm:$0xf]
  %v107 = vld [vmem:[%s0 + $0xe8] sm:$0xf]
  %v108 = vld [vmem:[%s0 + $0xec] sm:$0xf]
  %v109 = vld [vmem:[%s0 + $0xf0] sm:$0xf]
  %v110 = vld [vmem:[%s0 + $0xf4] sm:$0xf]
  %v111 = vld [vmem:[%s0 + $0xf8] sm:$0xf]
  %v112 = vld [vmem:[%s0 + $0xfc] sm:$0xf]
  %v113 = vld [vmem:[%s2] sm:$0xff]
  %v114 = vld [vmem:[%s2 + $0x8] sm:$0xff]
  %v115 = vld [vmem:[%s2 + $0x10] sm:$0xff]
  %v116 = vld [vmem:[%s2 + $0x18] sm:$0xff]
  %v117 = vld [vmem:[%s2 + $0x20] sm:$0xff]
  %v118 = vld [vmem:[%s2 + $0x28] sm:$0xff]
  %v119 = vld [vmem:[%s2 + $0x30] sm:$0xff]
  %v120 = vld [vmem:[%s2 + $0x38] sm:$0xff]
  %122 = vset.pattern.permute.xlu0 0
  %123 = vperm.xlu0 %122, %v113
  %v124 = vpop.permute.xlu0 %123
  %127 = vset.pattern.permute.xlu0 0
  %128 = vperm.xlu0 %127, %v114
  %v129 = vpop.permute.xlu0 %128
  %132 = vset.pattern.permute.xlu0 0
  %133 = vperm.xlu0 %132, %v115
  %v134 = vpop.permute.xlu0 %133
  %137 = vset.pattern.permute.xlu0 0
  %138 = vperm.xlu0 %137, %v116
  %v139 = vpop.permute.xlu0 %138
  %142 = vset.pattern.permute.xlu0 0
  %143 = vperm.xlu0 %142, %v117
  %v144 = vpop.permute.xlu0 %143
  %147 = vset.pattern.permute.xlu0 0
  %148 = vperm.xlu0 %147, %v118
  %v149 = vpop.permute.xlu0 %148
  %152 = vset.pattern.permute.xlu0 0
  %153 = vperm.xlu0 %152, %v119
  %v154 = vpop.permute.xlu0 %153
  %157 = vset.pattern.permute.xlu0 0
  %158 = vperm.xlu0 %157, %v120
  %v159 = vpop.permute.xlu0 %158
  %v177 = vunpack.c.l.b16 %v33
  %v178 = vunpack.c.h.b16 %v33
  %v179 = vunpack.c.l.b16 %v34
  %v180 = vunpack.c.h.b16 %v34
  %v181 = vunpack.c.l.b16 %v35
  %v182 = vunpack.c.h.b16 %v35
  %v183 = vunpack.c.l.b16 %v36
  %v184 = vunpack.c.h.b16 %v36
  %v185 = vunpack.c.l.b16 %v37
  %v186 = vunpack.c.h.b16 %v37
  %v187 = vunpack.c.l.b16 %v38
  %v188 = vunpack.c.h.b16 %v38
  %v189 = vunpack.c.l.b16 %v39
  %v190 = vunpack.c.h.b16 %v39
  %v191 = vunpack.c.l.b16 %v40
  %v192 = vunpack.c.h.b16 %v40
  %v193 = vunpack.c.l.b16 %v41
  %v194 = vunpack.c.h.b16 %v41
  %v195 = vunpack.c.l.b16 %v42
  %v196 = vunpack.c.h.b16 %v42
  %v197 = vunpack.c.l.b16 %v43
  %v198 = vunpack.c.h.b16 %v43
  %v199 = vunpack.c.l.b16 %v44
  %v200 = vunpack.c.h.b16 %v44
  %v201 = vunpack.c.l.b16 %v45
  %v202 = vunpack.c.h.b16 %v45
  %v203 = vunpack.c.l.b16 %v46
  %v204 = vunpack.c.h.b16 %v46
  %v205 = vunpack.c.l.b16 %v47
  %v206 = vunpack.c.h.b16 %v47
  %v207 = vunpack.c.l.b16 %v48
  %v208 = vunpack.c.h.b16 %v48
  %v209 = vpack.c.b16 %v181, %v177
  %v210 = vpack.c.b16 %v182, %v178
  %v211 = vpack.c.b16 %v183, %v179
  %v212 = vpack.c.b16 %v184, %v180
  %v213 = vpack.c.b16 %v189, %v185
  %v214 = vpack.c.b16 %v190, %v186
  %v215 = vpack.c.b16 %v191, %v187
  %v216 = vpack.c.b16 %v192, %v188
  %v217 = vpack.c.b16 %v197, %v193
  %v218 = vpack.c.b16 %v198, %v194
  %v219 = vpack.c.b16 %v199, %v195
  %v220 = vpack.c.b16 %v200, %v196
  %v221 = vpack.c.b16 %v205, %v201
  %v222 = vpack.c.b16 %v206, %v202
  %v223 = vpack.c.b16 %v207, %v203
  %v224 = vpack.c.b16 %v208, %v204
  %v305 = vunpack.c.l.b16 %v49
  %v306 = vunpack.c.l.b16 %v50
  %v307 = vunpack.c.l.b16 %v51
  %v308 = vunpack.c.l.b16 %v52
  %v309 = vunpack.c.l.b16 %v53
  %v310 = vunpack.c.l.b16 %v54
  %v311 = vunpack.c.l.b16 %v55
  %v312 = vunpack.c.l.b16 %v56
  %v313 = vunpack.c.l.b16 %v57
  %v314 = vunpack.c.l.b16 %v58
  %v315 = vunpack.c.l.b16 %v59
  %v316 = vunpack.c.l.b16 %v60
  %v317 = vunpack.c.l.b16 %v61
  %v318 = vunpack.c.l.b16 %v62
  %v319 = vunpack.c.l.b16 %v63
  %v320 = vunpack.c.l.b16 %v64
  %v321 = vunpack.c.l.b16 %v65
  %v322 = vunpack.c.l.b16 %v66
  %v323 = vunpack.c.l.b16 %v67
  %v324 = vunpack.c.l.b16 %v68
  %v325 = vunpack.c.l.b16 %v69
  %v326 = vunpack.c.l.b16 %v70
  %v327 = vunpack.c.l.b16 %v71
  %v328 = vunpack.c.l.b16 %v72
  %v329 = vunpack.c.l.b16 %v73
  %v330 = vunpack.c.l.b16 %v74
  %v331 = vunpack.c.l.b16 %v75
  %v332 = vunpack.c.l.b16 %v76
  %v333 = vunpack.c.l.b16 %v77
  %v334 = vunpack.c.l.b16 %v78
  %v335 = vunpack.c.l.b16 %v79
  %v336 = vunpack.c.l.b16 %v80
  %v337 = vunpack.c.l.b16 %v81
  %v338 = vunpack.c.l.b16 %v82
  %v339 = vunpack.c.l.b16 %v83
  %v340 = vunpack.c.l.b16 %v84
  %v341 = vunpack.c.l.b16 %v85
  %v342 = vunpack.c.l.b16 %v86
  %v343 = vunpack.c.l.b16 %v87
  %v344 = vunpack.c.l.b16 %v88
  %v345 = vunpack.c.l.b16 %v89
  %v346 = vunpack.c.l.b16 %v90
  %v347 = vunpack.c.l.b16 %v91
  %v348 = vunpack.c.l.b16 %v92
  %v349 = vunpack.c.l.b16 %v93
  %v350 = vunpack.c.l.b16 %v94
  %v351 = vunpack.c.l.b16 %v95
  %v352 = vunpack.c.l.b16 %v96
  %v353 = vunpack.c.l.b16 %v97
  %v354 = vunpack.c.l.b16 %v98
  %v355 = vunpack.c.l.b16 %v99
  %v356 = vunpack.c.l.b16 %v100
  %v357 = vunpack.c.l.b16 %v101
  %v358 = vunpack.c.l.b16 %v102
  %v359 = vunpack.c.l.b16 %v103
  %v360 = vunpack.c.l.b16 %v104
  %v361 = vunpack.c.l.b16 %v105
  %v362 = vunpack.c.l.b16 %v106
  %v363 = vunpack.c.l.b16 %v107
  %v364 = vunpack.c.l.b16 %v108
  %v365 = vunpack.c.l.b16 %v109
  %v366 = vunpack.c.l.b16 %v110
  %v367 = vunpack.c.l.b16 %v111
  %v368 = vunpack.c.l.b16 %v112
  %v369 = vpack.c.b16 %v306, %v305
  %v370 = vpack.c.b16 %v308, %v307
  %v371 = vpack.c.b16 %v310, %v309
  %v372 = vpack.c.b16 %v312, %v311
  %v373 = vpack.c.b16 %v314, %v313
  %v374 = vpack.c.b16 %v316, %v315
  %v375 = vpack.c.b16 %v318, %v317
  %v376 = vpack.c.b16 %v320, %v319
  %v377 = vpack.c.b16 %v322, %v321
  %v378 = vpack.c.b16 %v324, %v323
  %v379 = vpack.c.b16 %v326, %v325
  %v380 = vpack.c.b16 %v328, %v327
  %v381 = vpack.c.b16 %v330, %v329
  %v382 = vpack.c.b16 %v332, %v331
  %v383 = vpack.c.b16 %v334, %v333
  %v384 = vpack.c.b16 %v336, %v335
  %v385 = vpack.c.b16 %v338, %v337
  %v386 = vpack.c.b16 %v340, %v339
  %v387 = vpack.c.b16 %v342, %v341
  %v388 = vpack.c.b16 %v344, %v343
  %v389 = vpack.c.b16 %v346, %v345
  %v390 = vpack.c.b16 %v348, %v347
  %v391 = vpack.c.b16 %v350, %v349
  %v392 = vpack.c.b16 %v352, %v351
  %v393 = vpack.c.b16 %v354, %v353
  %v394 = vpack.c.b16 %v356, %v355
  %v395 = vpack.c.b16 %v358, %v357
  %v396 = vpack.c.b16 %v360, %v359
  %v397 = vpack.c.b16 %v362, %v361
  %v398 = vpack.c.b16 %v364, %v363
  %v399 = vpack.c.b16 %v366, %v365
  %v400 = vpack.c.b16 %v368, %v367
  %433 = vmatprep.subr.bf16.mxu0 0
  %434 = vmatpush1.bf16.msra.mxu0 %v369
  %435 = vmatprep.subr.bf16.mxu0 0
  %436 = vmatpush1.bf16.msra.mxu0 %v370
  %437 = vmatprep.subr.bf16.mxu0 0
  %438 = vmatpush1.bf16.msra.mxu0 %v371
  %439 = vmatprep.subr.bf16.mxu0 0
  %440 = vmatpush1.bf16.msra.mxu0 %v372
  %441 = vmatprep.subr.bf16.mxu0 0
  %442 = vmatpush1.bf16.msra.mxu0 %v373
  %443 = vmatprep.subr.bf16.mxu0 0
  %444 = vmatpush1.bf16.msra.mxu0 %v374
  %445 = vmatprep.subr.bf16.mxu0 0
  %446 = vmatpush1.bf16.msra.mxu0 %v375
  %447 = vmatprep.subr.bf16.mxu0 0
  %448 = vmatpush1.bf16.msra.mxu0 %v376
  %449 = vmatprep.subr.bf16.mxu0 0
  %450 = vmatpush1.bf16.msra.mxu0 %v377
  %451 = vmatprep.subr.bf16.mxu0 0
  %452 = vmatpush1.bf16.msra.mxu0 %v378
  %453 = vmatprep.subr.bf16.mxu0 0
  %454 = vmatpush1.bf16.msra.mxu0 %v379
  %455 = vmatprep.subr.bf16.mxu0 0
  %456 = vmatpush1.bf16.msra.mxu0 %v380
  %457 = vmatprep.subr.bf16.mxu0 0
  %458 = vmatpush1.bf16.msra.mxu0 %v381
  %459 = vmatprep.subr.bf16.mxu0 0
  %460 = vmatpush1.bf16.msra.mxu0 %v382
  %461 = vmatprep.subr.bf16.mxu0 0
  %462 = vmatpush1.bf16.msra.mxu0 %v383
  %463 = vmatprep.subr.bf16.mxu0 0
  %464 = vmatpush1.bf16.msra.mxu0 %v384
  %465 = vmatprep.mubr.bf16.mxu0 %v210
  %466 = vmatmul.mubr.bf16.gmra.mrb[0].mxu0 %v209
  %v467 = vpop.f32.mrb[0].mxu0
  %v468 = vadd.f32 %v124, %v467
  %v469 = vpop.f32.mrb[0].mxu0
  %v470 = vpop.f32.mrb[0].mxu0
  %v471 = vadd.f32 %v129, %v470
  %v472 = vpop.f32.mrb[0].mxu0
  %473 = vmatprep.mubr.bf16.mxu0 %v214
  %474 = vmatmul.mubr.bf16.gmra.mrb[0].mxu0 %v213
  %v475 = vpop.f32.mrb[0].mxu0
  %v476 = vadd.f32 %v134, %v475
  %v477 = vpop.f32.mrb[0].mxu0
  %v478 = vpop.f32.mrb[0].mxu0
  %v479 = vadd.f32 %v139, %v478
  %v480 = vpop.f32.mrb[0].mxu0
  %481 = vmatprep.mubr.bf16.mxu0 %v218
  %482 = vmatmul.mubr.bf16.gmra.mrb[0].mxu0 %v217
  %v483 = vpop.f32.mrb[0].mxu0
  %v484 = vadd.f32 %v144, %v483
  %v485 = vpop.f32.mrb[0].mxu0
  %v486 = vpop.f32.mrb[0].mxu0
  %v487 = vadd.f32 %v149, %v486
  %v488 = vpop.f32.mrb[0].mxu0
  %489 = vmatprep.mubr.bf16.mxu0 %v222
  %490 = vmatmul.mubr.bf16.gmra.mrb[0].mxu0 %v221
  %v491 = vpop.f32.mrb[0].mxu0
  %v492 = vadd.f32 %v154, %v491
  %v493 = vpop.f32.mrb[0].mxu0
  %v494 = vpop.f32.mrb[0].mxu0
  %v495 = vadd.f32 %v159, %v494
  %v496 = vpop.f32.mrb[0].mxu0
  %497 = vdwg.mxu0
  %498 = vmatprep.subr.bf16.mxu0 0
  %499 = vmatpush1.bf16.msra.mxu0 %v385
  %500 = vmatprep.subr.bf16.mxu0 0
  %501 = vmatpush1.bf16.msra.mxu0 %v386
  %502 = vmatprep.subr.bf16.mxu0 0
  %503 = vmatpush1.bf16.msra.mxu0 %v387
  %504 = vmatprep.subr.bf16.mxu0 0
  %505 = vmatpush1.bf16.msra.mxu0 %v388
  %506 = vmatprep.subr.bf16.mxu0 0
  %507 = vmatpush1.bf16.msra.mxu0 %v389
  %508 = vmatprep.subr.bf16.mxu0 0
  %509 = vmatpush1.bf16.msra.mxu0 %v390
  %510 = vmatprep.subr.bf16.mxu0 0
  %511 = vmatpush1.bf16.msra.mxu0 %v391
  %512 = vmatprep.subr.bf16.mxu0 0
  %513 = vmatpush1.bf16.msra.mxu0 %v392
  %514 = vmatprep.subr.bf16.mxu0 0
  %515 = vmatpush1.bf16.msra.mxu0 %v393
  %516 = vmatprep.subr.bf16.mxu0 0
  %517 = vmatpush1.bf16.msra.mxu0 %v394
  %518 = vmatprep.subr.bf16.mxu0 0
  %519 = vmatpush1.bf16.msra.mxu0 %v395
  %520 = vmatprep.subr.bf16.mxu0 0
  %521 = vmatpush1.bf16.msra.mxu0 %v396
  %522 = vmatprep.subr.bf16.mxu0 0
  %523 = vmatpush1.bf16.msra.mxu0 %v397
  %524 = vmatprep.subr.bf16.mxu0 0
  %525 = vmatpush1.bf16.msra.mxu0 %v398
  %526 = vmatprep.subr.bf16.mxu0 0
  %527 = vmatpush1.bf16.msra.mxu0 %v399
  %528 = vmatprep.subr.bf16.mxu0 0
  %529 = vmatpush1.bf16.msra.mxu0 %v400
  %530 = vmatprep.mubr.bf16.mxu0 %v212
  %531 = vmatmul.mubr.bf16.gmra.mrb[0].mxu0 %v211
  %v532 = vpop.f32.mrb[0].mxu0
  %v533 = vadd.f32 %v468, %v532
  %v534 = vpop.f32.mrb[0].mxu0
  %v535 = vpop.f32.mrb[0].mxu0
  %v536 = vadd.f32 %v471, %v535
  %v537 = vpop.f32.mrb[0].mxu0
  %538 = vmatprep.mubr.bf16.mxu0 %v216
  %539 = vmatmul.mubr.bf16.gmra.mrb[0].mxu0 %v215
  %v540 = vpop.f32.mrb[0].mxu0
  %v541 = vadd.f32 %v476, %v540
  %v542 = vpop.f32.mrb[0].mxu0
  %v543 = vpop.f32.mrb[0].mxu0
  %v544 = vadd.f32 %v479, %v543
  %v545 = vpop.f32.mrb[0].mxu0
  %546 = vmatprep.mubr.bf16.mxu0 %v220
  %547 = vmatmul.mubr.bf16.gmra.mrb[0].mxu0 %v219
  %v548 = vpop.f32.mrb[0].mxu0
  %v549 = vadd.f32 %v484, %v548
  %v550 = vpop.f32.mrb[0].mxu0
  %v551 = vpop.f32.mrb[0].mxu0
  %v552 = vadd.f32 %v487, %v551
  %v553 = vpop.f32.mrb[0].mxu0
  %554 = vmatprep.mubr.bf16.mxu0 %v224
  %555 = vmatmul.mubr.bf16.gmra.mrb[0].mxu0 %v223
  %v556 = vpop.f32.mrb[0].mxu0
  %v557 = vadd.f32 %v492, %v556
  %v558 = vpop.f32.mrb[0].mxu0
  %v559 = vpop.f32.mrb[0].mxu0
  %v560 = vadd.f32 %v495, %v559
  %v561 = vpop.f32.mrb[0].mxu0
  %562 = vdwg.mxu0
  %v563 = vmax.f32 %v533, 0.0
  %v564 = vmax.f32 %v536, 0.0
  %v565 = vmax.f32 %v541, 0.0
  %v566 = vmax.f32 %v544, 0.0
  %v567 = vmax.f32 %v549, 0.0
  %v568 = vmax.f32 %v552, 0.0
  %v569 = vmax.f32 %v557, 0.0
  %v570 = vmax.f32 %v560, 0.0
  %v571 = vpack.c.bf16 %v564, %v563
  %v572 = vpack.c.bf16 %v566, %v565
  %v573 = vpack.c.bf16 %v568, %v567
  %v574 = vpack.c.bf16 %v570, %v569
  %v575 = vld [vmem:[%s3] sm:$0xf]
  %v576 = vld [vmem:[%s3 + $0x4] sm:$0xf]
  %v577 = vld [vmem:[%s3 + $0x8] sm:$0xf]
  %v578 = vld [vmem:[%s3 + $0xc] sm:$0xf]
  %v579 = vld [vmem:[%s3 + $0x10] sm:$0xf]
  %v580 = vld [vmem:[%s3 + $0x14] sm:$0xf]
  %v581 = vld [vmem:[%s3 + $0x18] sm:$0xf]
  %v582 = vld [vmem:[%s3 + $0x1c] sm:$0xf]
  %s583 = scalar_lea.vmem %s3, 32
  %v584 = vld [vmem:[%s583] sm:$0xf]
  %v585 = vld [vmem:[%s583 + $0x4] sm:$0xf]
  %v586 = vld [vmem:[%s583 + $0x8] sm:$0xf]
  %v587 = vld [vmem:[%s583 + $0xc] sm:$0xf]
  %v588 = vld [vmem:[%s583 + $0x10] sm:$0xf]
  %v589 = vld [vmem:[%s583 + $0x14] sm:$0xf]
  %v590 = vld [vmem:[%s583 + $0x18] sm:$0xf]
  %v591 = vld [vmem:[%s583 + $0x1c] sm:$0xf]
  %v600 = vunpack.c.l.b16 %v584
  %v601 = vunpack.c.l.b16 %v585
  %v602 = vunpack.c.l.b16 %v586
  %v603 = vunpack.c.l.b16 %v587
  %v604 = vunpack.c.l.b16 %v588
  %v605 = vunpack.c.l.b16 %v589
  %v606 = vunpack.c.l.b16 %v590
  %v607 = vunpack.c.l.b16 %v591
  %v608 = vpack.c.b16 %v601, %v600
  %v609 = vpack.c.b16 %v603, %v602
  %v610 = vpack.c.b16 %v605, %v604
  %v611 = vpack.c.b16 %v607, %v606
  %616 = vrot.lane.b32.xlu0 %v571, 126
  %v617 = vpop.permute.xlu0 %616
  %618 = vrot.lane.b32.xlu0 %v572, 126
  %v619 = vpop.permute.xlu0 %618
  %620 = vrot.lane.b32.xlu0 %v573, 126
  %v621 = vpop.permute.xlu0 %620
  %622 = vrot.lane.b32.xlu0 %v574, 126
  %v623 = vpop.permute.xlu0 %622
  %vm628 = vcmask 523264
  %v630 = vsel %vm628, %v608, 0
  %v633 = vsel %vm628, %v609, 0
  %v636 = vsel %vm628, %v610, 0
  %v639 = vsel %vm628, %v611, 0
  %641 = vmatprep.subr.bf16.mxu0 0
  %642 = vmatpush1.bf16.msra.mxu0 %v617
  %643 = vmatprep.subr.bf16.mxu0 0
  %644 = vmatpush1.bf16.msra.mxu0 %v619
  %645 = vmatprep.subr.bf16.mxu0 0
  %646 = vmatpush1.bf16.msra.mxu0 %v621
  %647 = vmatprep.subr.bf16.mxu0 0
  %648 = vmatpush1.bf16.msra.mxu0 %v623
  %649 = vmatprep.subr.bf16.mxu0 0
  %650 = vmatpush1.bf16.msra.mxu0 0
  %651 = vmatprep.subr.bf16.mxu0 0
  %652 = vmatpush1.bf16.msra.mxu0 0
  %653 = vmatprep.subr.bf16.mxu0 0
  %654 = vmatpush1.bf16.msra.mxu0 0
  %655 = vmatprep.subr.bf16.mxu0 0
  %656 = vmatpush1.bf16.msra.mxu0 0
  %657 = vmatprep.subr.bf16.mxu0 0
  %658 = vmatpush1.bf16.msra.mxu0 0
  %659 = vmatprep.subr.bf16.mxu0 0
  %660 = vmatpush1.bf16.msra.mxu0 0
  %661 = vmatprep.subr.bf16.mxu0 0
  %662 = vmatpush1.bf16.msra.mxu0 0
  %663 = vmatprep.subr.bf16.mxu0 0
  %664 = vmatpush1.bf16.msra.mxu0 0
  %665 = vmatprep.subr.bf16.mxu0 0
  %666 = vmatpush1.bf16.msra.mxu0 0
  %667 = vmatprep.subr.bf16.mxu0 0
  %668 = vmatpush1.bf16.msra.mxu0 0
  %669 = vmatprep.subr.bf16.mxu0 0
  %670 = vmatpush1.bf16.msra.mxu0 0
  %671 = vmatprep.subr.bf16.mxu0 0
  %672 = vmatpush1.bf16.msra.mxu0 0
  %673 = vmatprep.mubr.bf16.mxu0 0
  %674 = vmatmul.mubr.bf16.gmra.mrb[0].mxu0 %v630
  %v675 = vpop.f32.mrb[0].mxu0
  %v676 = vadd.f32 0.0, %v675
  %v677 = vpop.f32.mrb[0].mxu0
  %v678 = vpop.f32.mrb[0].mxu0
  %v679 = vadd.f32 0.0, %v678
  %v680 = vpop.f32.mrb[0].mxu0
  %681 = vmatprep.mubr.bf16.mxu0 0
  %682 = vmatmul.mubr.bf16.gmra.mrb[0].mxu0 %v633
  %v683 = vpop.f32.mrb[0].mxu0
  %v684 = vadd.f32 0.0, %v683
  %v685 = vpop.f32.mrb[0].mxu0
  %v686 = vpop.f32.mrb[0].mxu0
  %v687 = vadd.f32 0.0, %v686
  %v688 = vpop.f32.mrb[0].mxu0
  %689 = vmatprep.mubr.bf16.mxu0 0
  %690 = vmatmul.mubr.bf16.gmra.mrb[0].mxu0 %v636
  %v691 = vpop.f32.mrb[0].mxu0
  %v692 = vadd.f32 0.0, %v691
  %v693 = vpop.f32.mrb[0].mxu0
  %v694 = vpop.f32.mrb[0].mxu0
  %v695 = vadd.f32 0.0, %v694
  %v696 = vpop.f32.mrb[0].mxu0
  %697 = vmatprep.mubr.bf16.mxu0 0
  %698 = vmatmul.mubr.bf16.gmra.mrb[0].mxu0 %v639
  %v699 = vpop.f32.mrb[0].mxu0
  %v700 = vadd.f32 0.0, %v699
  %v701 = vpop.f32.mrb[0].mxu0
  %v702 = vpop.f32.mrb[0].mxu0
  %v703 = vadd.f32 0.0, %v702
  %v704 = vpop.f32.mrb[0].mxu0
  %705 = vdwg.mxu0
  %v714 = vunpack.c.l.b16 %v575
  %v715 = vunpack.c.l.b16 %v576
  %v716 = vunpack.c.l.b16 %v577
  %v717 = vunpack.c.l.b16 %v578
  %v718 = vunpack.c.l.b16 %v579
  %v719 = vunpack.c.l.b16 %v580
  %v720 = vunpack.c.l.b16 %v581
  %v721 = vunpack.c.l.b16 %v582
  %v722 = vpack.c.b16 %v715, %v714
  %v723 = vpack.c.b16 %v717, %v716
  %v724 = vpack.c.b16 %v719, %v718
  %v725 = vpack.c.b16 %v721, %v720
  %v727 = vsel %vm628, %v722, 0
  %v730 = vsel %vm628, %v723, 0
  %v733 = vsel %vm628, %v724, 0
  %v736 = vsel %vm628, %v725, 0
  %738 = vmatprep.subr.bf16.mxu0 0
  %739 = vmatpush1.bf16.msra.mxu0 %v571
  %740 = vmatprep.subr.bf16.mxu0 0
  %741 = vmatpush1.bf16.msra.mxu0 %v572
  %742 = vmatprep.subr.bf16.mxu0 0
  %743 = vmatpush1.bf16.msra.mxu0 %v573
  %744 = vmatprep.subr.bf16.mxu0 0
  %745 = vmatpush1.bf16.msra.mxu0 %v574
  %746 = vmatprep.subr.bf16.mxu0 0
  %747 = vmatpush1.bf16.msra.mxu0 0
  %748 = vmatprep.subr.bf16.mxu0 0
  %749 = vmatpush1.bf16.msra.mxu0 0
  %750 = vmatprep.subr.bf16.mxu0 0
  %751 = vmatpush1.bf16.msra.mxu0 0
  %752 = vmatprep.subr.bf16.mxu0 0
  %753 = vmatpush1.bf16.msra.mxu0 0
  %754 = vmatprep.subr.bf16.mxu0 0
  %755 = vmatpush1.bf16.msra.mxu0 0
  %756 = vmatprep.subr.bf16.mxu0 0
  %757 = vmatpush1.bf16.msra.mxu0 0
  %758 = vmatprep.subr.bf16.mxu0 0
  %759 = vmatpush1.bf16.msra.mxu0 0
  %760 = vmatprep.subr.bf16.mxu0 0
  %761 = vmatpush1.bf16.msra.mxu0 0
  %762 = vmatprep.subr.bf16.mxu0 0
  %763 = vmatpush1.bf16.msra.mxu0 0
  %764 = vmatprep.subr.bf16.mxu0 0
  %765 = vmatpush1.bf16.msra.mxu0 0
  %766 = vmatprep.subr.bf16.mxu0 0
  %767 = vmatpush1.bf16.msra.mxu0 0
  %768 = vmatprep.subr.bf16.mxu0 0
  %769 = vmatpush1.bf16.msra.mxu0 0
  %770 = vmatprep.mubr.bf16.mxu0 0
  %771 = vmatmul.mubr.bf16.gmra.mrb[0].mxu0 %v727
  %v772 = vpop.f32.mrb[0].mxu0
  %v773 = vadd.f32 %v676, %v772
  %v774 = vpop.f32.mrb[0].mxu0
  %v775 = vpop.f32.mrb[0].mxu0
  %v776 = vadd.f32 %v679, %v775
  %v777 = vpop.f32.mrb[0].mxu0
  %778 = vmatprep.mubr.bf16.mxu0 0
  %779 = vmatmul.mubr.bf16.gmra.mrb[0].mxu0 %v730
  %v780 = vpop.f32.mrb[0].mxu0
  %v781 = vadd.f32 %v684, %v780
  %v782 = vpop.f32.mrb[0].mxu0
  %v783 = vpop.f32.mrb[0].mxu0
  %v784 = vadd.f32 %v687, %v783
  %v785 = vpop.f32.mrb[0].mxu0
  %786 = vmatprep.mubr.bf16.mxu0 0
  %787 = vmatmul.mubr.bf16.gmra.mrb[0].mxu0 %v733
  %v788 = vpop.f32.mrb[0].mxu0
  %v789 = vadd.f32 %v692, %v788
  %v790 = vpop.f32.mrb[0].mxu0
  %v791 = vpop.f32.mrb[0].mxu0
  %v792 = vadd.f32 %v695, %v791
  %v793 = vpop.f32.mrb[0].mxu0
  %794 = vmatprep.mubr.bf16.mxu0 0
  %795 = vmatmul.mubr.bf16.gmra.mrb[0].mxu0 %v736
  %v796 = vpop.f32.mrb[0].mxu0
  %v797 = vadd.f32 %v700, %v796
  %v798 = vpop.f32.mrb[0].mxu0
  %v799 = vpop.f32.mrb[0].mxu0
  %v800 = vadd.f32 %v703, %v799
  %v801 = vpop.f32.mrb[0].mxu0
  %802 = vdwg.mxu0
  %s803 = scalar_lea.vmem %s3, 64
  %v804 = vld [vmem:[%s803] sm:$0xf]
  %v805 = vld [vmem:[%s803 + $0x4] sm:$0xf]
  %v806 = vld [vmem:[%s803 + $0x8] sm:$0xf]
  %v807 = vld [vmem:[%s803 + $0xc] sm:$0xf]
  %v808 = vld [vmem:[%s803 + $0x10] sm:$0xf]
  %v809 = vld [vmem:[%s803 + $0x14] sm:$0xf]
  %v810 = vld [vmem:[%s803 + $0x18] sm:$0xf]
  %v811 = vld [vmem:[%s803 + $0x1c] sm:$0xf]
  %v820 = vunpack.c.l.b16 %v804
  %v821 = vunpack.c.l.b16 %v805
  %v822 = vunpack.c.l.b16 %v806
  %v823 = vunpack.c.l.b16 %v807
  %v824 = vunpack.c.l.b16 %v808
  %v825 = vunpack.c.l.b16 %v809
  %v826 = vunpack.c.l.b16 %v810
  %v827 = vunpack.c.l.b16 %v811
  %v828 = vpack.c.b16 %v821, %v820
  %v829 = vpack.c.b16 %v823, %v822
  %v830 = vpack.c.b16 %v825, %v824
  %v831 = vpack.c.b16 %v827, %v826
  %832 = vrot.lane.b32.xlu0 %v571, 124
  %v833 = vpop.permute.xlu0 %832
  %834 = vrot.lane.b32.xlu0 %v572, 124
  %v835 = vpop.permute.xlu0 %834
  %836 = vrot.lane.b32.xlu0 %v573, 124
  %v837 = vpop.permute.xlu0 %836
  %838 = vrot.lane.b32.xlu0 %v574, 124
  %v839 = vpop.permute.xlu0 %838
  %v845 = vsel %vm628, %v828, 0
  %v848 = vsel %vm628, %v829, 0
  %v851 = vsel %vm628, %v830, 0
  %v854 = vsel %vm628, %v831, 0
  %856 = vmatprep.subr.bf16.mxu0 0
  %857 = vmatpush1.bf16.msra.mxu0 %v833
  %858 = vmatprep.subr.bf16.mxu0 0
  %859 = vmatpush1.bf16.msra.mxu0 %v835
  %860 = vmatprep.subr.bf16.mxu0 0
  %861 = vmatpush1.bf16.msra.mxu0 %v837
  %862 = vmatprep.subr.bf16.mxu0 0
  %863 = vmatpush1.bf16.msra.mxu0 %v839
  %864 = vmatprep.subr.bf16.mxu0 0
  %865 = vmatpush1.bf16.msra.mxu0 0
  %866 = vmatprep.subr.bf16.mxu0 0
  %867 = vmatpush1.bf16.msra.mxu0 0
  %868 = vmatprep.subr.bf16.mxu0 0
  %869 = vmatpush1.bf16.msra.mxu0 0
  %870 = vmatprep.subr.bf16.mxu0 0
  %871 = vmatpush1.bf16.msra.mxu0 0
  %872 = vmatprep.subr.bf16.mxu0 0
  %873 = vmatpush1.bf16.msra.mxu0 0
  %874 = vmatprep.subr.bf16.mxu0 0
  %875 = vmatpush1.bf16.msra.mxu0 0
  %876 = vmatprep.subr.bf16.mxu0 0
  %877 = vmatpush1.bf16.msra.mxu0 0
  %878 = vmatprep.subr.bf16.mxu0 0
  %879 = vmatpush1.bf16.msra.mxu0 0
  %880 = vmatprep.subr.bf16.mxu0 0
  %881 = vmatpush1.bf16.msra.mxu0 0
  %882 = vmatprep.subr.bf16.mxu0 0
  %883 = vmatpush1.bf16.msra.mxu0 0
  %884 = vmatprep.subr.bf16.mxu0 0
  %885 = vmatpush1.bf16.msra.mxu0 0
  %886 = vmatprep.subr.bf16.mxu0 0
  %887 = vmatpush1.bf16.msra.mxu0 0
  %888 = vmatprep.mubr.bf16.mxu0 0
  %889 = vmatmul.mubr.bf16.gmra.mrb[0].mxu0 %v845
  %v890 = vpop.f32.mrb[0].mxu0
  %v891 = vadd.f32 0.0, %v890
  %v892 = vpop.f32.mrb[0].mxu0
  %v893 = vpop.f32.mrb[0].mxu0
  %v894 = vadd.f32 0.0, %v893
  %v895 = vpop.f32.mrb[0].mxu0
  %896 = vmatprep.mubr.bf16.mxu0 0
  %897 = vmatmul.mubr.bf16.gmra.mrb[0].mxu0 %v848
  %v898 = vpop.f32.mrb[0].mxu0
  %v899 = vadd.f32 0.0, %v898
  %v900 = vpop.f32.mrb[0].mxu0
  %v901 = vpop.f32.mrb[0].mxu0
  %v902 = vadd.f32 0.0, %v901
  %v903 = vpop.f32.mrb[0].mxu0
  %904 = vmatprep.mubr.bf16.mxu0 0
  %905 = vmatmul.mubr.bf16.gmra.mrb[0].mxu0 %v851
  %v906 = vpop.f32.mrb[0].mxu0
  %v907 = vadd.f32 0.0, %v906
  %v908 = vpop.f32.mrb[0].mxu0
  %v909 = vpop.f32.mrb[0].mxu0
  %v910 = vadd.f32 0.0, %v909
  %v911 = vpop.f32.mrb[0].mxu0
  %912 = vmatprep.mubr.bf16.mxu0 0
  %913 = vmatmul.mubr.bf16.gmra.mrb[0].mxu0 %v854
  %v914 = vpop.f32.mrb[0].mxu0
  %v915 = vadd.f32 0.0, %v914
  %v916 = vpop.f32.mrb[0].mxu0
  %v917 = vpop.f32.mrb[0].mxu0
  %v918 = vadd.f32 0.0, %v917
  %v919 = vpop.f32.mrb[0].mxu0
  %920 = vdwg.mxu0
  %v921 = vadd.f32 %v773, %v891
  %v922 = vadd.f32 %v776, %v894
  %v923 = vadd.f32 %v781, %v899
  %v924 = vadd.f32 %v784, %v902
  %v925 = vadd.f32 %v789, %v907
  %v926 = vadd.f32 %v792, %v910
  %v927 = vadd.f32 %v797, %v915
  %v928 = vadd.f32 %v800, %v918
  %s929 = scalar_lea.vmem %s3, 96
  %v930 = vld [vmem:[%s929] sm:$0xf]
  %v931 = vld [vmem:[%s929 + $0x4] sm:$0xf]
  %v932 = vld [vmem:[%s929 + $0x8] sm:$0xf]
  %v933 = vld [vmem:[%s929 + $0xc] sm:$0xf]
  %v934 = vld [vmem:[%s929 + $0x10] sm:$0xf]
  %v935 = vld [vmem:[%s929 + $0x14] sm:$0xf]
  %v936 = vld [vmem:[%s929 + $0x18] sm:$0xf]
  %v937 = vld [vmem:[%s929 + $0x1c] sm:$0xf]
  %v946 = vunpack.c.l.b16 %v930
  %v947 = vunpack.c.l.b16 %v931
  %v948 = vunpack.c.l.b16 %v932
  %v949 = vunpack.c.l.b16 %v933
  %v950 = vunpack.c.l.b16 %v934
  %v951 = vunpack.c.l.b16 %v935
  %v952 = vunpack.c.l.b16 %v936
  %v953 = vunpack.c.l.b16 %v937
  %v954 = vpack.c.b16 %v947, %v946
  %v955 = vpack.c.b16 %v949, %v948
  %v956 = vpack.c.b16 %v951, %v950
  %v957 = vpack.c.b16 %v953, %v952
  %958 = vrot.lane.b32.xlu0 %v571, 122
  %v959 = vpop.permute.xlu0 %958
  %960 = vrot.lane.b32.xlu0 %v572, 122
  %v961 = vpop.permute.xlu0 %960
  %962 = vrot.lane.b32.xlu0 %v573, 122
  %v963 = vpop.permute.xlu0 %962
  %964 = vrot.lane.b32.xlu0 %v574, 122
  %v965 = vpop.permute.xlu0 %964
  %v971 = vsel %vm628, %v954, 0
  %v974 = vsel %vm628, %v955, 0
  %v977 = vsel %vm628, %v956, 0
  %v980 = vsel %vm628, %v957, 0
  %982 = vmatprep.subr.bf16.mxu0 0
  %983 = vmatpush1.bf16.msra.mxu0 %v959
  %984 = vmatprep.subr.bf16.mxu0 0
  %985 = vmatpush1.bf16.msra.mxu0 %v961
  %986 = vmatprep.subr.bf16.mxu0 0
  %987 = vmatpush1.bf16.msra.mxu0 %v963
  %988 = vmatprep.subr.bf16.mxu0 0
  %989 = vmatpush1.bf16.msra.mxu0 %v965
  %990 = vmatprep.subr.bf16.mxu0 0
  %991 = vmatpush1.bf16.msra.mxu0 0
  %992 = vmatprep.subr.bf16.mxu0 0
  %993 = vmatpush1.bf16.msra.mxu0 0
  %994 = vmatprep.subr.bf16.mxu0 0
  %995 = vmatpush1.bf16.msra.mxu0 0
  %996 = vmatprep.subr.bf16.mxu0 0
  %997 = vmatpush1.bf16.msra.mxu0 0
  %998 = vmatprep.subr.bf16.mxu0 0
  %999 = vmatpush1.bf16.msra.mxu0 0
  %1000 = vmatprep.subr.bf16.mxu0 0
  %1001 = vmatpush1.bf16.msra.mxu0 0
  %1002 = vmatprep.subr.bf16.mxu0 0
  %1003 = vmatpush1.bf16.msra.mxu0 0
  %1004 = vmatprep.subr.bf16.mxu0 0
  %1005 = vmatpush1.bf16.msra.mxu0 0
  %1006 = vmatprep.subr.bf16.mxu0 0
  %1007 = vmatpush1.bf16.msra.mxu0 0
  %1008 = vmatprep.subr.bf16.mxu0 0
  %1009 = vmatpush1.bf16.msra.mxu0 0
  %1010 = vmatprep.subr.bf16.mxu0 0
  %1011 = vmatpush1.bf16.msra.mxu0 0
  %1012 = vmatprep.subr.bf16.mxu0 0
  %1013 = vmatpush1.bf16.msra.mxu0 0
  %1014 = vmatprep.mubr.bf16.mxu0 0
  %1015 = vmatmul.mubr.bf16.gmra.mrb[0].mxu0 %v971
  %v1016 = vpop.f32.mrb[0].mxu0
  %v1017 = vadd.f32 0.0, %v1016
  %v1018 = vpop.f32.mrb[0].mxu0
  %v1019 = vpop.f32.mrb[0].mxu0
  %v1020 = vadd.f32 0.0, %v1019
  %v1021 = vpop.f32.mrb[0].mxu0
  %1022 = vmatprep.mubr.bf16.mxu0 0
  %1023 = vmatmul.mubr.bf16.gmra.mrb[0].mxu0 %v974
  %v1024 = vpop.f32.mrb[0].mxu0
  %v1025 = vadd.f32 0.0, %v1024
  %v1026 = vpop.f32.mrb[0].mxu0
  %v1027 = vpop.f32.mrb[0].mxu0
  %v1028 = vadd.f32 0.0, %v1027
  %v1029 = vpop.f32.mrb[0].mxu0
  %1030 = vmatprep.mubr.bf16.mxu0 0
  %1031 = vmatmul.mubr.bf16.gmra.mrb[0].mxu0 %v977
  %v1032 = vpop.f32.mrb[0].mxu0
  %v1033 = vadd.f32 0.0, %v1032
  %v1034 = vpop.f32.mrb[0].mxu0
  %v1035 = vpop.f32.mrb[0].mxu0
  %v1036 = vadd.f32 0.0, %v1035
  %v1037 = vpop.f32.mrb[0].mxu0
  %1038 = vmatprep.mubr.bf16.mxu0 0
  %1039 = vmatmul.mubr.bf16.gmra.mrb[0].mxu0 %v980
  %v1040 = vpop.f32.mrb[0].mxu0
  %v1041 = vadd.f32 0.0, %v1040
  %v1042 = vpop.f32.mrb[0].mxu0
  %v1043 = vpop.f32.mrb[0].mxu0
  %v1044 = vadd.f32 0.0, %v1043
  %v1045 = vpop.f32.mrb[0].mxu0
  %1046 = vdwg.mxu0
  %v1047 = vadd.f32 %v921, %v1017
  %v1048 = vadd.f32 %v922, %v1020
  %v1049 = vadd.f32 %v923, %v1025
  %v1050 = vadd.f32 %v924, %v1028
  %v1051 = vadd.f32 %v925, %v1033
  %v1052 = vadd.f32 %v926, %v1036
  %v1053 = vadd.f32 %v927, %v1041
  %v1054 = vadd.f32 %v928, %v1044
  %s1055 = scalar_lea.vmem %s3, 128
  %v1056 = vld [vmem:[%s1055] sm:$0xf]
  %v1057 = vld [vmem:[%s1055 + $0x4] sm:$0xf]
  %v1058 = vld [vmem:[%s1055 + $0x8] sm:$0xf]
  %v1059 = vld [vmem:[%s1055 + $0xc] sm:$0xf]
  %v1060 = vld [vmem:[%s1055 + $0x10] sm:$0xf]
  %v1061 = vld [vmem:[%s1055 + $0x14] sm:$0xf]
  %v1062 = vld [vmem:[%s1055 + $0x18] sm:$0xf]
  %v1063 = vld [vmem:[%s1055 + $0x1c] sm:$0xf]
  %v1072 = vunpack.c.l.b16 %v1056
  %v1073 = vunpack.c.l.b16 %v1057
  %v1074 = vunpack.c.l.b16 %v1058
  %v1075 = vunpack.c.l.b16 %v1059
  %v1076 = vunpack.c.l.b16 %v1060
  %v1077 = vunpack.c.l.b16 %v1061
  %v1078 = vunpack.c.l.b16 %v1062
  %v1079 = vunpack.c.l.b16 %v1063
  %v1080 = vpack.c.b16 %v1073, %v1072
  %v1081 = vpack.c.b16 %v1075, %v1074
  %v1082 = vpack.c.b16 %v1077, %v1076
  %v1083 = vpack.c.b16 %v1079, %v1078
  %1084 = vrot.lane.b32.xlu0 %v571, 120
  %v1085 = vpop.permute.xlu0 %1084
  %1086 = vrot.lane.b32.xlu0 %v572, 120
  %v1087 = vpop.permute.xlu0 %1086
  %1088 = vrot.lane.b32.xlu0 %v573, 120
  %v1089 = vpop.permute.xlu0 %1088
  %1090 = vrot.lane.b32.xlu0 %v574, 120
  %v1091 = vpop.permute.xlu0 %1090
  %v1097 = vsel %vm628, %v1080, 0
  %v1100 = vsel %vm628, %v1081, 0
  %v1103 = vsel %vm628, %v1082, 0
  %v1106 = vsel %vm628, %v1083, 0
  %1108 = vmatprep.subr.bf16.mxu0 0
  %1109 = vmatpush1.bf16.msra.mxu0 %v1085
  %1110 = vmatprep.subr.bf16.mxu0 0
  %1111 = vmatpush1.bf16.msra.mxu0 %v1087
  %1112 = vmatprep.subr.bf16.mxu0 0
  %1113 = vmatpush1.bf16.msra.mxu0 %v1089
  %1114 = vmatprep.subr.bf16.mxu0 0
  %1115 = vmatpush1.bf16.msra.mxu0 %v1091
  %1116 = vmatprep.subr.bf16.mxu0 0
  %1117 = vmatpush1.bf16.msra.mxu0 0
  %1118 = vmatprep.subr.bf16.mxu0 0
  %1119 = vmatpush1.bf16.msra.mxu0 0
  %1120 = vmatprep.subr.bf16.mxu0 0
  %1121 = vmatpush1.bf16.msra.mxu0 0
  %1122 = vmatprep.subr.bf16.mxu0 0
  %1123 = vmatpush1.bf16.msra.mxu0 0
  %1124 = vmatprep.subr.bf16.mxu0 0
  %1125 = vmatpush1.bf16.msra.mxu0 0
  %1126 = vmatprep.subr.bf16.mxu0 0
  %1127 = vmatpush1.bf16.msra.mxu0 0
  %1128 = vmatprep.subr.bf16.mxu0 0
  %1129 = vmatpush1.bf16.msra.mxu0 0
  %1130 = vmatprep.subr.bf16.mxu0 0
  %1131 = vmatpush1.bf16.msra.mxu0 0
  %1132 = vmatprep.subr.bf16.mxu0 0
  %1133 = vmatpush1.bf16.msra.mxu0 0
  %1134 = vmatprep.subr.bf16.mxu0 0
  %1135 = vmatpush1.bf16.msra.mxu0 0
  %1136 = vmatprep.subr.bf16.mxu0 0
  %1137 = vmatpush1.bf16.msra.mxu0 0
  %1138 = vmatprep.subr.bf16.mxu0 0
  %1139 = vmatpush1.bf16.msra.mxu0 0
  %1140 = vmatprep.mubr.bf16.mxu0 0
  %1141 = vmatmul.mubr.bf16.gmra.mrb[0].mxu0 %v1097
  %v1142 = vpop.f32.mrb[0].mxu0
  %v1143 = vadd.f32 0.0, %v1142
  %v1144 = vpop.f32.mrb[0].mxu0
  %v1145 = vpop.f32.mrb[0].mxu0
  %v1146 = vadd.f32 0.0, %v1145
  %v1147 = vpop.f32.mrb[0].mxu0
  %1148 = vmatprep.mubr.bf16.mxu0 0
  %1149 = vmatmul.mubr.bf16.gmra.mrb[0].mxu0 %v1100
  %v1150 = vpop.f32.mrb[0].mxu0
  %v1151 = vadd.f32 0.0, %v1150
  %v1152 = vpop.f32.mrb[0].mxu0
  %v1153 = vpop.f32.mrb[0].mxu0
  %v1154 = vadd.f32 0.0, %v1153
  %v1155 = vpop.f32.mrb[0].mxu0
  %1156 = vmatprep.mubr.bf16.mxu0 0
  %1157 = vmatmul.mubr.bf16.gmra.mrb[0].mxu0 %v1103
  %v1158 = vpop.f32.mrb[0].mxu0
  %v1159 = vadd.f32 0.0, %v1158
  %v1160 = vpop.f32.mrb[0].mxu0
  %v1161 = vpop.f32.mrb[0].mxu0
  %v1162 = vadd.f32 0.0, %v1161
  %v1163 = vpop.f32.mrb[0].mxu0
  %1164 = vmatprep.mubr.bf16.mxu0 0
  %1165 = vmatmul.mubr.bf16.gmra.mrb[0].mxu0 %v1106
  %v1166 = vpop.f32.mrb[0].mxu0
  %v1167 = vadd.f32 0.0, %v1166
  %v1168 = vpop.f32.mrb[0].mxu0
  %v1169 = vpop.f32.mrb[0].mxu0
  %v1170 = vadd.f32 0.0, %v1169
  %v1171 = vpop.f32.mrb[0].mxu0
  %1172 = vdwg.mxu0
  %v1173 = vadd.f32 %v1047, %v1143
  %v1174 = vadd.f32 %v1048, %v1146
  %v1175 = vadd.f32 %v1049, %v1151
  %v1176 = vadd.f32 %v1050, %v1154
  %v1177 = vadd.f32 %v1051, %v1159
  %v1178 = vadd.f32 %v1052, %v1162
  %v1179 = vadd.f32 %v1053, %v1167
  %v1180 = vadd.f32 %v1054, %v1170
  %s1181 = scalar_lea.vmem %s3, 160
  %v1182 = vld [vmem:[%s1181] sm:$0xf]
  %v1183 = vld [vmem:[%s1181 + $0x4] sm:$0xf]
  %v1184 = vld [vmem:[%s1181 + $0x8] sm:$0xf]
  %v1185 = vld [vmem:[%s1181 + $0xc] sm:$0xf]
  %v1186 = vld [vmem:[%s1181 + $0x10] sm:$0xf]
  %v1187 = vld [vmem:[%s1181 + $0x14] sm:$0xf]
  %v1188 = vld [vmem:[%s1181 + $0x18] sm:$0xf]
  %v1189 = vld [vmem:[%s1181 + $0x1c] sm:$0xf]
  %v1198 = vunpack.c.l.b16 %v1182
  %v1199 = vunpack.c.l.b16 %v1183
  %v1200 = vunpack.c.l.b16 %v1184
  %v1201 = vunpack.c.l.b16 %v1185
  %v1202 = vunpack.c.l.b16 %v1186
  %v1203 = vunpack.c.l.b16 %v1187
  %v1204 = vunpack.c.l.b16 %v1188
  %v1205 = vunpack.c.l.b16 %v1189
  %v1206 = vpack.c.b16 %v1199, %v1198
  %v1207 = vpack.c.b16 %v1201, %v1200
  %v1208 = vpack.c.b16 %v1203, %v1202
  %v1209 = vpack.c.b16 %v1205, %v1204
  %1210 = vrot.lane.b32.xlu0 %v571, 118
  %v1211 = vpop.permute.xlu0 %1210
  %1212 = vrot.lane.b32.xlu0 %v572, 118
  %v1213 = vpop.permute.xlu0 %1212
  %1214 = vrot.lane.b32.xlu0 %v573, 118
  %v1215 = vpop.permute.xlu0 %1214
  %1216 = vrot.lane.b32.xlu0 %v574, 118
  %v1217 = vpop.permute.xlu0 %1216
  %v1223 = vsel %vm628, %v1206, 0
  %v1226 = vsel %vm628, %v1207, 0
  %v1229 = vsel %vm628, %v1208, 0
  %v1232 = vsel %vm628, %v1209, 0
  %1234 = vmatprep.subr.bf16.mxu0 0
  %1235 = vmatpush1.bf16.msra.mxu0 %v1211
  %1236 = vmatprep.subr.bf16.mxu0 0
  %1237 = vmatpush1.bf16.msra.mxu0 %v1213
  %1238 = vmatprep.subr.bf16.mxu0 0
  %1239 = vmatpush1.bf16.msra.mxu0 %v1215
  %1240 = vmatprep.subr.bf16.mxu0 0
  %1241 = vmatpush1.bf16.msra.mxu0 %v1217
  %1242 = vmatprep.subr.bf16.mxu0 0
  %1243 = vmatpush1.bf16.msra.mxu0 0
  %1244 = vmatprep.subr.bf16.mxu0 0
  %1245 = vmatpush1.bf16.msra.mxu0 0
  %1246 = vmatprep.subr.bf16.mxu0 0
  %1247 = vmatpush1.bf16.msra.mxu0 0
  %1248 = vmatprep.subr.bf16.mxu0 0
  %1249 = vmatpush1.bf16.msra.mxu0 0
  %1250 = vmatprep.subr.bf16.mxu0 0
  %1251 = vmatpush1.bf16.msra.mxu0 0
  %1252 = vmatprep.subr.bf16.mxu0 0
  %1253 = vmatpush1.bf16.msra.mxu0 0
  %1254 = vmatprep.subr.bf16.mxu0 0
  %1255 = vmatpush1.bf16.msra.mxu0 0
  %1256 = vmatprep.subr.bf16.mxu0 0
  %1257 = vmatpush1.bf16.msra.mxu0 0
  %1258 = vmatprep.subr.bf16.mxu0 0
  %1259 = vmatpush1.bf16.msra.mxu0 0
  %1260 = vmatprep.subr.bf16.mxu0 0
  %1261 = vmatpush1.bf16.msra.mxu0 0
  %1262 = vmatprep.subr.bf16.mxu0 0
  %1263 = vmatpush1.bf16.msra.mxu0 0
  %1264 = vmatprep.subr.bf16.mxu0 0
  %1265 = vmatpush1.bf16.msra.mxu0 0
  %1266 = vmatprep.mubr.bf16.mxu0 0
  %1267 = vmatmul.mubr.bf16.gmra.mrb[0].mxu0 %v1223
  %v1268 = vpop.f32.mrb[0].mxu0
  %v1269 = vadd.f32 0.0, %v1268
  %v1270 = vpop.f32.mrb[0].mxu0
  %v1271 = vpop.f32.mrb[0].mxu0
  %v1272 = vadd.f32 0.0, %v1271
  %v1273 = vpop.f32.mrb[0].mxu0
  %1274 = vmatprep.mubr.bf16.mxu0 0
  %1275 = vmatmul.mubr.bf16.gmra.mrb[0].mxu0 %v1226
  %v1276 = vpop.f32.mrb[0].mxu0
  %v1277 = vadd.f32 0.0, %v1276
  %v1278 = vpop.f32.mrb[0].mxu0
  %v1279 = vpop.f32.mrb[0].mxu0
  %v1280 = vadd.f32 0.0, %v1279
  %v1281 = vpop.f32.mrb[0].mxu0
  %1282 = vmatprep.mubr.bf16.mxu0 0
  %1283 = vmatmul.mubr.bf16.gmra.mrb[0].mxu0 %v1229
  %v1284 = vpop.f32.mrb[0].mxu0
  %v1285 = vadd.f32 0.0, %v1284
  %v1286 = vpop.f32.mrb[0].mxu0
  %v1287 = vpop.f32.mrb[0].mxu0
  %v1288 = vadd.f32 0.0, %v1287
  %v1289 = vpop.f32.mrb[0].mxu0
  %1290 = vmatprep.mubr.bf16.mxu0 0
  %1291 = vmatmul.mubr.bf16.gmra.mrb[0].mxu0 %v1232
  %v1292 = vpop.f32.mrb[0].mxu0
  %v1293 = vadd.f32 0.0, %v1292
  %v1294 = vpop.f32.mrb[0].mxu0
  %v1295 = vpop.f32.mrb[0].mxu0
  %v1296 = vadd.f32 0.0, %v1295
  %v1297 = vpop.f32.mrb[0].mxu0
  %1298 = vdwg.mxu0
  %v1299 = vadd.f32 %v1173, %v1269
  %v1300 = vadd.f32 %v1174, %v1272
  %v1301 = vadd.f32 %v1175, %v1277
  %v1302 = vadd.f32 %v1176, %v1280
  %v1303 = vadd.f32 %v1177, %v1285
  %v1304 = vadd.f32 %v1178, %v1288
  %v1305 = vadd.f32 %v1179, %v1293
  %v1306 = vadd.f32 %v1180, %v1296
  %s1307 = scalar_lea.vmem %s3, 192
  %v1308 = vld [vmem:[%s1307] sm:$0xf]
  %v1309 = vld [vmem:[%s1307 + $0x4] sm:$0xf]
  %v1310 = vld [vmem:[%s1307 + $0x8] sm:$0xf]
  %v1311 = vld [vmem:[%s1307 + $0xc] sm:$0xf]
  %v1312 = vld [vmem:[%s1307 + $0x10] sm:$0xf]
  %v1313 = vld [vmem:[%s1307 + $0x14] sm:$0xf]
  %v1314 = vld [vmem:[%s1307 + $0x18] sm:$0xf]
  %v1315 = vld [vmem:[%s1307 + $0x1c] sm:$0xf]
  %v1324 = vunpack.c.l.b16 %v1308
  %v1325 = vunpack.c.l.b16 %v1309
  %v1326 = vunpack.c.l.b16 %v1310
  %v1327 = vunpack.c.l.b16 %v1311
  %v1328 = vunpack.c.l.b16 %v1312
  %v1329 = vunpack.c.l.b16 %v1313
  %v1330 = vunpack.c.l.b16 %v1314
  %v1331 = vunpack.c.l.b16 %v1315
  %v1332 = vpack.c.b16 %v1325, %v1324
  %v1333 = vpack.c.b16 %v1327, %v1326
  %v1334 = vpack.c.b16 %v1329, %v1328
  %v1335 = vpack.c.b16 %v1331, %v1330
  %1336 = vrot.lane.b32.xlu0 %v571, 116
  %v1337 = vpop.permute.xlu0 %1336
  %1338 = vrot.lane.b32.xlu0 %v572, 116
  %v1339 = vpop.permute.xlu0 %1338
  %1340 = vrot.lane.b32.xlu0 %v573, 116
  %v1341 = vpop.permute.xlu0 %1340
  %1342 = vrot.lane.b32.xlu0 %v574, 116
  %v1343 = vpop.permute.xlu0 %1342
  %v1349 = vsel %vm628, %v1332, 0
  %v1352 = vsel %vm628, %v1333, 0
  %v1355 = vsel %vm628, %v1334, 0
  %v1358 = vsel %vm628, %v1335, 0
  %1360 = vmatprep.subr.bf16.mxu0 0
  %1361 = vmatpush1.bf16.msra.mxu0 %v1337
  %1362 = vmatprep.subr.bf16.mxu0 0
  %1363 = vmatpush1.bf16.msra.mxu0 %v1339
  %1364 = vmatprep.subr.bf16.mxu0 0
  %1365 = vmatpush1.bf16.msra.mxu0 %v1341
  %1366 = vmatprep.subr.bf16.mxu0 0
  %1367 = vmatpush1.bf16.msra.mxu0 %v1343
  %1368 = vmatprep.subr.bf16.mxu0 0
  %1369 = vmatpush1.bf16.msra.mxu0 0
  %1370 = vmatprep.subr.bf16.mxu0 0
  %1371 = vmatpush1.bf16.msra.mxu0 0
  %1372 = vmatprep.subr.bf16.mxu0 0
  %1373 = vmatpush1.bf16.msra.mxu0 0
  %1374 = vmatprep.subr.bf16.mxu0 0
  %1375 = vmatpush1.bf16.msra.mxu0 0
  %1376 = vmatprep.subr.bf16.mxu0 0
  %1377 = vmatpush1.bf16.msra.mxu0 0
  %1378 = vmatprep.subr.bf16.mxu0 0
  %1379 = vmatpush1.bf16.msra.mxu0 0
  %1380 = vmatprep.subr.bf16.mxu0 0
  %1381 = vmatpush1.bf16.msra.mxu0 0
  %1382 = vmatprep.subr.bf16.mxu0 0
  %1383 = vmatpush1.bf16.msra.mxu0 0
  %1384 = vmatprep.subr.bf16.mxu0 0
  %1385 = vmatpush1.bf16.msra.mxu0 0
  %1386 = vmatprep.subr.bf16.mxu0 0
  %1387 = vmatpush1.bf16.msra.mxu0 0
  %1388 = vmatprep.subr.bf16.mxu0 0
  %1389 = vmatpush1.bf16.msra.mxu0 0
  %1390 = vmatprep.subr.bf16.mxu0 0
  %1391 = vmatpush1.bf16.msra.mxu0 0
  %1392 = vmatprep.mubr.bf16.mxu0 0
  %1393 = vmatmul.mubr.bf16.gmra.mrb[0].mxu0 %v1349
  %v1394 = vpop.f32.mrb[0].mxu0
  %v1395 = vadd.f32 0.0, %v1394
  %v1396 = vpop.f32.mrb[0].mxu0
  %v1397 = vpop.f32.mrb[0].mxu0
  %v1398 = vadd.f32 0.0, %v1397
  %v1399 = vpop.f32.mrb[0].mxu0
  %1400 = vmatprep.mubr.bf16.mxu0 0
  %1401 = vmatmul.mubr.bf16.gmra.mrb[0].mxu0 %v1352
  %v1402 = vpop.f32.mrb[0].mxu0
  %v1403 = vadd.f32 0.0, %v1402
  %v1404 = vpop.f32.mrb[0].mxu0
  %v1405 = vpop.f32.mrb[0].mxu0
  %v1406 = vadd.f32 0.0, %v1405
  %v1407 = vpop.f32.mrb[0].mxu0
  %1408 = vmatprep.mubr.bf16.mxu0 0
  %1409 = vmatmul.mubr.bf16.gmra.mrb[0].mxu0 %v1355
  %v1410 = vpop.f32.mrb[0].mxu0
  %v1411 = vadd.f32 0.0, %v1410
  %v1412 = vpop.f32.mrb[0].mxu0
  %v1413 = vpop.f32.mrb[0].mxu0
  %v1414 = vadd.f32 0.0, %v1413
  %v1415 = vpop.f32.mrb[0].mxu0
  %1416 = vmatprep.mubr.bf16.mxu0 0
  %1417 = vmatmul.mubr.bf16.gmra.mrb[0].mxu0 %v1358
  %v1418 = vpop.f32.mrb[0].mxu0
  %v1419 = vadd.f32 0.0, %v1418
  %v1420 = vpop.f32.mrb[0].mxu0
  %v1421 = vpop.f32.mrb[0].mxu0
  %v1422 = vadd.f32 0.0, %v1421
  %v1423 = vpop.f32.mrb[0].mxu0
  %1424 = vdwg.mxu0
  %v1425 = vadd.f32 %v1299, %v1395
  %v1426 = vadd.f32 %v1300, %v1398
  %v1427 = vadd.f32 %v1301, %v1403
  %v1428 = vadd.f32 %v1302, %v1406
  %v1429 = vadd.f32 %v1303, %v1411
  %v1430 = vadd.f32 %v1304, %v1414
  %v1431 = vadd.f32 %v1305, %v1419
  %v1432 = vadd.f32 %v1306, %v1422
  %s1433 = scalar_lea.vmem %s3, 224
  %v1434 = vld [vmem:[%s1433] sm:$0xf]
  %v1435 = vld [vmem:[%s1433 + $0x4] sm:$0xf]
  %v1436 = vld [vmem:[%s1433 + $0x8] sm:$0xf]
  %v1437 = vld [vmem:[%s1433 + $0xc] sm:$0xf]
  %v1438 = vld [vmem:[%s1433 + $0x10] sm:$0xf]
  %v1439 = vld [vmem:[%s1433 + $0x14] sm:$0xf]
  %v1440 = vld [vmem:[%s1433 + $0x18] sm:$0xf]
  %v1441 = vld [vmem:[%s1433 + $0x1c] sm:$0xf]
  %v1450 = vunpack.c.l.b16 %v1434
  %v1451 = vunpack.c.l.b16 %v1435
  %v1452 = vunpack.c.l.b16 %v1436
  %v1453 = vunpack.c.l.b16 %v1437
  %v1454 = vunpack.c.l.b16 %v1438
  %v1455 = vunpack.c.l.b16 %v1439
  %v1456 = vunpack.c.l.b16 %v1440
  %v1457 = vunpack.c.l.b16 %v1441
  %v1458 = vpack.c.b16 %v1451, %v1450
  %v1459 = vpack.c.b16 %v1453, %v1452
  %v1460 = vpack.c.b16 %v1455, %v1454
  %v1461 = vpack.c.b16 %v1457, %v1456
  %1462 = vrot.lane.b32.xlu0 %v571, 114
  %v1463 = vpop.permute.xlu0 %1462
  %1464 = vrot.lane.b32.xlu0 %v572, 114
  %v1465 = vpop.permute.xlu0 %1464
  %1466 = vrot.lane.b32.xlu0 %v573, 114
  %v1467 = vpop.permute.xlu0 %1466
  %1468 = vrot.lane.b32.xlu0 %v574, 114
  %v1469 = vpop.permute.xlu0 %1468
  %v1475 = vsel %vm628, %v1458, 0
  %v1478 = vsel %vm628, %v1459, 0
  %v1481 = vsel %vm628, %v1460, 0
  %v1484 = vsel %vm628, %v1461, 0
  %1486 = vmatprep.subr.bf16.mxu0 0
  %1487 = vmatpush1.bf16.msra.mxu0 %v1463
  %1488 = vmatprep.subr.bf16.mxu0 0
  %1489 = vmatpush1.bf16.msra.mxu0 %v1465
  %1490 = vmatprep.subr.bf16.mxu0 0
  %1491 = vmatpush1.bf16.msra.mxu0 %v1467
  %1492 = vmatprep.subr.bf16.mxu0 0
  %1493 = vmatpush1.bf16.msra.mxu0 %v1469
  %1494 = vmatprep.subr.bf16.mxu0 0
  %1495 = vmatpush1.bf16.msra.mxu0 0
  %1496 = vmatprep.subr.bf16.mxu0 0
  %1497 = vmatpush1.bf16.msra.mxu0 0
  %1498 = vmatprep.subr.bf16.mxu0 0
  %1499 = vmatpush1.bf16.msra.mxu0 0
  %1500 = vmatprep.subr.bf16.mxu0 0
  %1501 = vmatpush1.bf16.msra.mxu0 0
  %1502 = vmatprep.subr.bf16.mxu0 0
  %1503 = vmatpush1.bf16.msra.mxu0 0
  %1504 = vmatprep.subr.bf16.mxu0 0
  %1505 = vmatpush1.bf16.msra.mxu0 0
  %1506 = vmatprep.subr.bf16.mxu0 0
  %1507 = vmatpush1.bf16.msra.mxu0 0
  %1508 = vmatprep.subr.bf16.mxu0 0
  %1509 = vmatpush1.bf16.msra.mxu0 0
  %1510 = vmatprep.subr.bf16.mxu0 0
  %1511 = vmatpush1.bf16.msra.mxu0 0
  %1512 = vmatprep.subr.bf16.mxu0 0
  %1513 = vmatpush1.bf16.msra.mxu0 0
  %1514 = vmatprep.subr.bf16.mxu0 0
  %1515 = vmatpush1.bf16.msra.mxu0 0
  %1516 = vmatprep.subr.bf16.mxu0 0
  %1517 = vmatpush1.bf16.msra.mxu0 0
  %1518 = vmatprep.mubr.bf16.mxu0 0
  %1519 = vmatmul.mubr.bf16.gmra.mrb[0].mxu0 %v1475
  %v1520 = vpop.f32.mrb[0].mxu0
  %v1521 = vadd.f32 0.0, %v1520
  %v1522 = vpop.f32.mrb[0].mxu0
  %v1523 = vpop.f32.mrb[0].mxu0
  %v1524 = vadd.f32 0.0, %v1523
  %v1525 = vpop.f32.mrb[0].mxu0
  %1526 = vmatprep.mubr.bf16.mxu0 0
  %1527 = vmatmul.mubr.bf16.gmra.mrb[0].mxu0 %v1478
  %v1528 = vpop.f32.mrb[0].mxu0
  %v1529 = vadd.f32 0.0, %v1528
  %v1530 = vpop.f32.mrb[0].mxu0
  %v1531 = vpop.f32.mrb[0].mxu0
  %v1532 = vadd.f32 0.0, %v1531
  %v1533 = vpop.f32.mrb[0].mxu0
  %1534 = vmatprep.mubr.bf16.mxu0 0
  %1535 = vmatmul.mubr.bf16.gmra.mrb[0].mxu0 %v1481
  %v1536 = vpop.f32.mrb[0].mxu0
  %v1537 = vadd.f32 0.0, %v1536
  %v1538 = vpop.f32.mrb[0].mxu0
  %v1539 = vpop.f32.mrb[0].mxu0
  %v1540 = vadd.f32 0.0, %v1539
  %v1541 = vpop.f32.mrb[0].mxu0
  %1542 = vmatprep.mubr.bf16.mxu0 0
  %1543 = vmatmul.mubr.bf16.gmra.mrb[0].mxu0 %v1484
  %v1544 = vpop.f32.mrb[0].mxu0
  %v1545 = vadd.f32 0.0, %v1544
  %v1546 = vpop.f32.mrb[0].mxu0
  %v1547 = vpop.f32.mrb[0].mxu0
  %v1548 = vadd.f32 0.0, %v1547
  %v1549 = vpop.f32.mrb[0].mxu0
  %1550 = vdwg.mxu0
  %v1551 = vadd.f32 %v1425, %v1521
  %v1552 = vadd.f32 %v1426, %v1524
  %v1553 = vadd.f32 %v1427, %v1529
  %v1554 = vadd.f32 %v1428, %v1532
  %v1555 = vadd.f32 %v1429, %v1537
  %v1556 = vadd.f32 %v1430, %v1540
  %v1557 = vadd.f32 %v1431, %v1545
  %v1558 = vadd.f32 %v1432, %v1548
  %s1559 = scalar_lea.vmem %s3, 256
  %v1560 = vld [vmem:[%s1559] sm:$0xf]
  %v1561 = vld [vmem:[%s1559 + $0x4] sm:$0xf]
  %v1562 = vld [vmem:[%s1559 + $0x8] sm:$0xf]
  %v1563 = vld [vmem:[%s1559 + $0xc] sm:$0xf]
  %v1564 = vld [vmem:[%s1559 + $0x10] sm:$0xf]
  %v1565 = vld [vmem:[%s1559 + $0x14] sm:$0xf]
  %v1566 = vld [vmem:[%s1559 + $0x18] sm:$0xf]
  %v1567 = vld [vmem:[%s1559 + $0x1c] sm:$0xf]
  %v1576 = vunpack.c.l.b16 %v1560
  %v1577 = vunpack.c.l.b16 %v1561
  %v1578 = vunpack.c.l.b16 %v1562
  %v1579 = vunpack.c.l.b16 %v1563
  %v1580 = vunpack.c.l.b16 %v1564
  %v1581 = vunpack.c.l.b16 %v1565
  %v1582 = vunpack.c.l.b16 %v1566
  %v1583 = vunpack.c.l.b16 %v1567
  %v1584 = vpack.c.b16 %v1577, %v1576
  %v1585 = vpack.c.b16 %v1579, %v1578
  %v1586 = vpack.c.b16 %v1581, %v1580
  %v1587 = vpack.c.b16 %v1583, %v1582
  %1588 = vrot.lane.b32.xlu0 %v571, 112
  %v1589 = vpop.permute.xlu0 %1588
  %1590 = vrot.lane.b32.xlu0 %v572, 112
  %v1591 = vpop.permute.xlu0 %1590
  %1592 = vrot.lane.b32.xlu0 %v573, 112
  %v1593 = vpop.permute.xlu0 %1592
  %1594 = vrot.lane.b32.xlu0 %v574, 112
  %v1595 = vpop.permute.xlu0 %1594
  %v1601 = vsel %vm628, %v1584, 0
  %v1604 = vsel %vm628, %v1585, 0
  %v1607 = vsel %vm628, %v1586, 0
  %v1610 = vsel %vm628, %v1587, 0
  %1612 = vmatprep.subr.bf16.mxu0 0
  %1613 = vmatpush1.bf16.msra.mxu0 %v1589
  %1614 = vmatprep.subr.bf16.mxu0 0
  %1615 = vmatpush1.bf16.msra.mxu0 %v1591
  %1616 = vmatprep.subr.bf16.mxu0 0
  %1617 = vmatpush1.bf16.msra.mxu0 %v1593
  %1618 = vmatprep.subr.bf16.mxu0 0
  %1619 = vmatpush1.bf16.msra.mxu0 %v1595
  %1620 = vmatprep.subr.bf16.mxu0 0
  %1621 = vmatpush1.bf16.msra.mxu0 0
  %1622 = vmatprep.subr.bf16.mxu0 0
  %1623 = vmatpush1.bf16.msra.mxu0 0
  %1624 = vmatprep.subr.bf16.mxu0 0
  %1625 = vmatpush1.bf16.msra.mxu0 0
  %1626 = vmatprep.subr.bf16.mxu0 0
  %1627 = vmatpush1.bf16.msra.mxu0 0
  %1628 = vmatprep.subr.bf16.mxu0 0
  %1629 = vmatpush1.bf16.msra.mxu0 0
  %1630 = vmatprep.subr.bf16.mxu0 0
  %1631 = vmatpush1.bf16.msra.mxu0 0
  %1632 = vmatprep.subr.bf16.mxu0 0
  %1633 = vmatpush1.bf16.msra.mxu0 0
  %1634 = vmatprep.subr.bf16.mxu0 0
  %1635 = vmatpush1.bf16.msra.mxu0 0
  %1636 = vmatprep.subr.bf16.mxu0 0
  %1637 = vmatpush1.bf16.msra.mxu0 0
  %1638 = vmatprep.subr.bf16.mxu0 0
  %1639 = vmatpush1.bf16.msra.mxu0 0
  %1640 = vmatprep.subr.bf16.mxu0 0
  %1641 = vmatpush1.bf16.msra.mxu0 0
  %1642 = vmatprep.subr.bf16.mxu0 0
  %1643 = vmatpush1.bf16.msra.mxu0 0
  %1644 = vmatprep.mubr.bf16.mxu0 0
  %1645 = vmatmul.mubr.bf16.gmra.mrb[0].mxu0 %v1601
  %v1646 = vpop.f32.mrb[0].mxu0
  %v1647 = vadd.f32 0.0, %v1646
  %v1648 = vpop.f32.mrb[0].mxu0
  %v1649 = vpop.f32.mrb[0].mxu0
  %v1650 = vadd.f32 0.0, %v1649
  %v1651 = vpop.f32.mrb[0].mxu0
  %1652 = vmatprep.mubr.bf16.mxu0 0
  %1653 = vmatmul.mubr.bf16.gmra.mrb[0].mxu0 %v1604
  %v1654 = vpop.f32.mrb[0].mxu0
  %v1655 = vadd.f32 0.0, %v1654
  %v1656 = vpop.f32.mrb[0].mxu0
  %v1657 = vpop.f32.mrb[0].mxu0
  %v1658 = vadd.f32 0.0, %v1657
  %v1659 = vpop.f32.mrb[0].mxu0
  %1660 = vmatprep.mubr.bf16.mxu0 0
  %1661 = vmatmul.mubr.bf16.gmra.mrb[0].mxu0 %v1607
  %v1662 = vpop.f32.mrb[0].mxu0
  %v1663 = vadd.f32 0.0, %v1662
  %v1664 = vpop.f32.mrb[0].mxu0
  %v1665 = vpop.f32.mrb[0].mxu0
  %v1666 = vadd.f32 0.0, %v1665
  %v1667 = vpop.f32.mrb[0].mxu0
  %1668 = vmatprep.mubr.bf16.mxu0 0
  %1669 = vmatmul.mubr.bf16.gmra.mrb[0].mxu0 %v1610
  %v1670 = vpop.f32.mrb[0].mxu0
  %v1671 = vadd.f32 0.0, %v1670
  %v1672 = vpop.f32.mrb[0].mxu0
  %v1673 = vpop.f32.mrb[0].mxu0
  %v1674 = vadd.f32 0.0, %v1673
  %v1675 = vpop.f32.mrb[0].mxu0
  %1676 = vdwg.mxu0
  %v1677 = vadd.f32 %v1551, %v1647
  %v1678 = vadd.f32 %v1552, %v1650
  %v1679 = vadd.f32 %v1553, %v1655
  %v1680 = vadd.f32 %v1554, %v1658
  %v1681 = vadd.f32 %v1555, %v1663
  %v1682 = vadd.f32 %v1556, %v1666
  %v1683 = vadd.f32 %v1557, %v1671
  %v1684 = vadd.f32 %v1558, %v1674
  %v1685 = vld [vmem:[%s4] sm:$0xff]
  %v1686 = vld [vmem:[%s4 + $0x8] sm:$0xff]
  %v1687 = vld [vmem:[%s4 + $0x10] sm:$0xff]
  %v1688 = vld [vmem:[%s4 + $0x18] sm:$0xff]
  %v1689 = vld [vmem:[%s4 + $0x20] sm:$0xff]
  %v1690 = vld [vmem:[%s4 + $0x28] sm:$0xff]
  %v1691 = vld [vmem:[%s4 + $0x30] sm:$0xff]
  %v1692 = vld [vmem:[%s4 + $0x38] sm:$0xff]
  %1694 = vset.pattern.permute.xlu0 0
  %1695 = vperm.xlu0 %1694, %v1685
  %v1696 = vpop.permute.xlu0 %1695
  %1699 = vset.pattern.permute.xlu0 0
  %1700 = vperm.xlu0 %1699, %v1686
  %v1701 = vpop.permute.xlu0 %1700
  %1704 = vset.pattern.permute.xlu0 0
  %1705 = vperm.xlu0 %1704, %v1687
  %v1706 = vpop.permute.xlu0 %1705
  %1709 = vset.pattern.permute.xlu0 0
  %1710 = vperm.xlu0 %1709, %v1688
  %v1711 = vpop.permute.xlu0 %1710
  %1714 = vset.pattern.permute.xlu0 0
  %1715 = vperm.xlu0 %1714, %v1689
  %v1716 = vpop.permute.xlu0 %1715
  %1719 = vset.pattern.permute.xlu0 0
  %1720 = vperm.xlu0 %1719, %v1690
  %v1721 = vpop.permute.xlu0 %1720
  %1724 = vset.pattern.permute.xlu0 0
  %1725 = vperm.xlu0 %1724, %v1691
  %v1726 = vpop.permute.xlu0 %1725
  %1729 = vset.pattern.permute.xlu0 0
  %1730 = vperm.xlu0 %1729, %v1692
  %v1731 = vpop.permute.xlu0 %1730
  %v1733 = vadd.f32 %v1677, %v1696
  %v1734 = vadd.f32 %v1678, %v1701
  %v1735 = vadd.f32 %v1679, %v1706
  %v1736 = vadd.f32 %v1680, %v1711
  %v1737 = vadd.f32 %v1681, %v1716
  %v1738 = vadd.f32 %v1682, %v1721
  %v1739 = vadd.f32 %v1683, %v1726
  %v1740 = vadd.f32 %v1684, %v1731
  %v1741 = vmax.f32 %v1733, 0.0
  %v1742 = vmax.f32 %v1734, 0.0
  %v1743 = vmax.f32 %v1735, 0.0
  %v1744 = vmax.f32 %v1736, 0.0
  %v1745 = vmax.f32 %v1737, 0.0
  %v1746 = vmax.f32 %v1738, 0.0
  %v1747 = vmax.f32 %v1739, 0.0
  %v1748 = vmax.f32 %v1740, 0.0
  %v1749 = vpack.c.bf16 %v1742, %v1741
  %v1750 = vpack.c.bf16 %v1744, %v1743
  %v1751 = vpack.c.bf16 %v1746, %v1745
  %v1752 = vpack.c.bf16 %v1748, %v1747
  %v1753 = vld [vmem:[%s5] sm:$0xf]
  %v1754 = vld [vmem:[%s5 + $0x4] sm:$0xf]
  %v1755 = vld [vmem:[%s5 + $0x8] sm:$0xf]
  %v1756 = vld [vmem:[%s5 + $0xc] sm:$0xf]
  %v1757 = vld [vmem:[%s5 + $0x10] sm:$0xf]
  %v1758 = vld [vmem:[%s5 + $0x14] sm:$0xf]
  %v1759 = vld [vmem:[%s5 + $0x18] sm:$0xf]
  %v1760 = vld [vmem:[%s5 + $0x1c] sm:$0xf]
  %v1761 = vld [vmem:[%s5 + $0x20] sm:$0xf]
  %v1762 = vld [vmem:[%s5 + $0x24] sm:$0xf]
  %v1763 = vld [vmem:[%s5 + $0x28] sm:$0xf]
  %v1764 = vld [vmem:[%s5 + $0x2c] sm:$0xf]
  %v1765 = vld [vmem:[%s5 + $0x30] sm:$0xf]
  %v1766 = vld [vmem:[%s5 + $0x34] sm:$0xf]
  %v1767 = vld [vmem:[%s5 + $0x38] sm:$0xf]
  %v1768 = vld [vmem:[%s5 + $0x3c] sm:$0xf]
  %v1769 = vld [vmem:[%s5 + $0x40] sm:$0xf]
  %v1770 = vld [vmem:[%s5 + $0x44] sm:$0xf]
  %v1771 = vld [vmem:[%s5 + $0x48] sm:$0xf]
  %v1772 = vld [vmem:[%s5 + $0x4c] sm:$0xf]
  %v1773 = vld [vmem:[%s5 + $0x50] sm:$0xf]
  %v1774 = vld [vmem:[%s5 + $0x54] sm:$0xf]
  %v1775 = vld [vmem:[%s5 + $0x58] sm:$0xf]
  %v1776 = vld [vmem:[%s5 + $0x5c] sm:$0xf]
  %v1777 = vld [vmem:[%s5 + $0x60] sm:$0xf]
  %v1778 = vld [vmem:[%s5 + $0x64] sm:$0xf]
  %v1779 = vld [vmem:[%s5 + $0x68] sm:$0xf]
  %v1780 = vld [vmem:[%s5 + $0x6c] sm:$0xf]
  %v1781 = vld [vmem:[%s5 + $0x70] sm:$0xf]
  %v1782 = vld [vmem:[%s5 + $0x74] sm:$0xf]
  %v1783 = vld [vmem:[%s5 + $0x78] sm:$0xf]
  %v1784 = vld [vmem:[%s5 + $0x7c] sm:$0xf]
  %v1785 = vld [vmem:[%s5 + $0x80] sm:$0xf]
  %v1786 = vld [vmem:[%s5 + $0x84] sm:$0xf]
  %v1787 = vld [vmem:[%s5 + $0x88] sm:$0xf]
  %v1788 = vld [vmem:[%s5 + $0x8c] sm:$0xf]
  %v1789 = vld [vmem:[%s5 + $0x90] sm:$0xf]
  %v1790 = vld [vmem:[%s5 + $0x94] sm:$0xf]
  %v1791 = vld [vmem:[%s5 + $0x98] sm:$0xf]
  %v1792 = vld [vmem:[%s5 + $0x9c] sm:$0xf]
  %v1793 = vld [vmem:[%s5 + $0xa0] sm:$0xf]
  %v1794 = vld [vmem:[%s5 + $0xa4] sm:$0xf]
  %v1795 = vld [vmem:[%s5 + $0xa8] sm:$0xf]
  %v1796 = vld [vmem:[%s5 + $0xac] sm:$0xf]
  %v1797 = vld [vmem:[%s5 + $0xb0] sm:$0xf]
  %v1798 = vld [vmem:[%s5 + $0xb4] sm:$0xf]
  %v1799 = vld [vmem:[%s5 + $0xb8] sm:$0xf]
  %v1800 = vld [vmem:[%s5 + $0xbc] sm:$0xf]
  %v1801 = vld [vmem:[%s5 + $0xc0] sm:$0xf]
  %v1802 = vld [vmem:[%s5 + $0xc4] sm:$0xf]
  %v1803 = vld [vmem:[%s5 + $0xc8] sm:$0xf]
  %v1804 = vld [vmem:[%s5 + $0xcc] sm:$0xf]
  %v1805 = vld [vmem:[%s5 + $0xd0] sm:$0xf]
  %v1806 = vld [vmem:[%s5 + $0xd4] sm:$0xf]
  %v1807 = vld [vmem:[%s5 + $0xd8] sm:$0xf]
  %v1808 = vld [vmem:[%s5 + $0xdc] sm:$0xf]
  %v1809 = vld [vmem:[%s5 + $0xe0] sm:$0xf]
  %v1810 = vld [vmem:[%s5 + $0xe4] sm:$0xf]
  %v1811 = vld [vmem:[%s5 + $0xe8] sm:$0xf]
  %v1812 = vld [vmem:[%s5 + $0xec] sm:$0xf]
  %v1813 = vld [vmem:[%s5 + $0xf0] sm:$0xf]
  %v1814 = vld [vmem:[%s5 + $0xf4] sm:$0xf]
  %v1815 = vld [vmem:[%s5 + $0xf8] sm:$0xf]
  %v1816 = vld [vmem:[%s5 + $0xfc] sm:$0xf]
  %v1817 = vld [vmem:[%s6] sm:$0xff]
  %v1818 = vld [vmem:[%s6 + $0x8] sm:$0xff]
  %v1819 = vld [vmem:[%s6 + $0x10] sm:$0xff]
  %v1820 = vld [vmem:[%s6 + $0x18] sm:$0xff]
  %v1821 = vld [vmem:[%s6 + $0x20] sm:$0xff]
  %v1822 = vld [vmem:[%s6 + $0x28] sm:$0xff]
  %v1823 = vld [vmem:[%s6 + $0x30] sm:$0xff]
  %v1824 = vld [vmem:[%s6 + $0x38] sm:$0xff]
  %v1825 = vld [vmem:[%s6 + $0x40] sm:$0xff]
  %v1826 = vld [vmem:[%s6 + $0x48] sm:$0xff]
  %v1827 = vld [vmem:[%s6 + $0x50] sm:$0xff]
  %v1828 = vld [vmem:[%s6 + $0x58] sm:$0xff]
  %v1829 = vld [vmem:[%s6 + $0x60] sm:$0xff]
  %v1830 = vld [vmem:[%s6 + $0x68] sm:$0xff]
  %v1831 = vld [vmem:[%s6 + $0x70] sm:$0xff]
  %v1832 = vld [vmem:[%s6 + $0x78] sm:$0xff]
  %v1833 = vld [vmem:[%s6 + $0x80] sm:$0xff]
  %v1834 = vld [vmem:[%s6 + $0x88] sm:$0xff]
  %v1835 = vld [vmem:[%s6 + $0x90] sm:$0xff]
  %v1836 = vld [vmem:[%s6 + $0x98] sm:$0xff]
  %v1837 = vld [vmem:[%s6 + $0xa0] sm:$0xff]
  %v1838 = vld [vmem:[%s6 + $0xa8] sm:$0xff]
  %v1839 = vld [vmem:[%s6 + $0xb0] sm:$0xff]
  %v1840 = vld [vmem:[%s6 + $0xb8] sm:$0xff]
  %v1841 = vld [vmem:[%s6 + $0xc0] sm:$0xff]
  %v1842 = vld [vmem:[%s6 + $0xc8] sm:$0xff]
  %v1843 = vld [vmem:[%s6 + $0xd0] sm:$0xff]
  %v1844 = vld [vmem:[%s6 + $0xd8] sm:$0xff]
  %v1845 = vld [vmem:[%s6 + $0xe0] sm:$0xff]
  %v1846 = vld [vmem:[%s6 + $0xe8] sm:$0xff]
  %v1847 = vld [vmem:[%s6 + $0xf0] sm:$0xff]
  %v1848 = vld [vmem:[%s6 + $0xf8] sm:$0xff]
  %v1849 = vld [vmem:[%s6 + $0x100] sm:$0xff]
  %v1850 = vld [vmem:[%s6 + $0x108] sm:$0xff]
  %v1851 = vld [vmem:[%s6 + $0x110] sm:$0xff]
  %v1852 = vld [vmem:[%s6 + $0x118] sm:$0xff]
  %v1853 = vld [vmem:[%s6 + $0x120] sm:$0xff]
  %v1854 = vld [vmem:[%s6 + $0x128] sm:$0xff]
  %v1855 = vld [vmem:[%s6 + $0x130] sm:$0xff]
  %v1856 = vld [vmem:[%s6 + $0x138] sm:$0xff]
  %v1857 = vld [vmem:[%s6 + $0x140] sm:$0xff]
  %v1858 = vld [vmem:[%s6 + $0x148] sm:$0xff]
  %v1859 = vld [vmem:[%s6 + $0x150] sm:$0xff]
  %v1860 = vld [vmem:[%s6 + $0x158] sm:$0xff]
  %v1861 = vld [vmem:[%s6 + $0x160] sm:$0xff]
  %v1862 = vld [vmem:[%s6 + $0x168] sm:$0xff]
  %v1863 = vld [vmem:[%s6 + $0x170] sm:$0xff]
  %v1864 = vld [vmem:[%s6 + $0x178] sm:$0xff]
  %v1865 = vld [vmem:[%s6 + $0x180] sm:$0xff]
  %v1866 = vld [vmem:[%s6 + $0x188] sm:$0xff]
  %v1867 = vld [vmem:[%s6 + $0x190] sm:$0xff]
  %v1868 = vld [vmem:[%s6 + $0x198] sm:$0xff]
  %v1869 = vld [vmem:[%s6 + $0x1a0] sm:$0xff]
  %v1870 = vld [vmem:[%s6 + $0x1a8] sm:$0xff]
  %v1871 = vld [vmem:[%s6 + $0x1b0] sm:$0xff]
  %v1872 = vld [vmem:[%s6 + $0x1b8] sm:$0xff]
  %v1873 = vld [vmem:[%s6 + $0x1c0] sm:$0xff]
  %v1874 = vld [vmem:[%s6 + $0x1c8] sm:$0xff]
  %v1875 = vld [vmem:[%s6 + $0x1d0] sm:$0xff]
  %v1876 = vld [vmem:[%s6 + $0x1d8] sm:$0xff]
  %v1877 = vld [vmem:[%s6 + $0x1e0] sm:$0xff]
  %v1878 = vld [vmem:[%s6 + $0x1e8] sm:$0xff]
  %v1879 = vld [vmem:[%s6 + $0x1f0] sm:$0xff]
  %v1880 = vld [vmem:[%s6 + $0x1f8] sm:$0xff]
  %1882 = vset.pattern.permute.xlu0 0
  %1883 = vperm.xlu0 %1882, %v1817
  %v1884 = vpop.permute.xlu0 %1883
  %1887 = vset.pattern.permute.xlu0 0
  %1888 = vperm.xlu0 %1887, %v1818
  %v1889 = vpop.permute.xlu0 %1888
  %1892 = vset.pattern.permute.xlu0 0
  %1893 = vperm.xlu0 %1892, %v1819
  %v1894 = vpop.permute.xlu0 %1893
  %1897 = vset.pattern.permute.xlu0 0
  %1898 = vperm.xlu0 %1897, %v1820
  %v1899 = vpop.permute.xlu0 %1898
  %1902 = vset.pattern.permute.xlu0 0
  %1903 = vperm.xlu0 %1902, %v1821
  %v1904 = vpop.permute.xlu0 %1903
  %1907 = vset.pattern.permute.xlu0 0
  %1908 = vperm.xlu0 %1907, %v1822
  %v1909 = vpop.permute.xlu0 %1908
  %1912 = vset.pattern.permute.xlu0 0
  %1913 = vperm.xlu0 %1912, %v1823
  %v1914 = vpop.permute.xlu0 %1913
  %1917 = vset.pattern.permute.xlu0 0
  %1918 = vperm.xlu0 %1917, %v1824
  %v1919 = vpop.permute.xlu0 %1918
  %1922 = vset.pattern.permute.xlu0 0
  %1923 = vperm.xlu0 %1922, %v1825
  %v1924 = vpop.permute.xlu0 %1923
  %1927 = vset.pattern.permute.xlu0 0
  %1928 = vperm.xlu0 %1927, %v1826
  %v1929 = vpop.permute.xlu0 %1928
  %1932 = vset.pattern.permute.xlu0 0
  %1933 = vperm.xlu0 %1932, %v1827
  %v1934 = vpop.permute.xlu0 %1933
  %1937 = vset.pattern.permute.xlu0 0
  %1938 = vperm.xlu0 %1937, %v1828
  %v1939 = vpop.permute.xlu0 %1938
  %1942 = vset.pattern.permute.xlu0 0
  %1943 = vperm.xlu0 %1942, %v1829
  %v1944 = vpop.permute.xlu0 %1943
  %1947 = vset.pattern.permute.xlu0 0
  %1948 = vperm.xlu0 %1947, %v1830
  %v1949 = vpop.permute.xlu0 %1948
  %1952 = vset.pattern.permute.xlu0 0
  %1953 = vperm.xlu0 %1952, %v1831
  %v1954 = vpop.permute.xlu0 %1953
  %1957 = vset.pattern.permute.xlu0 0
  %1958 = vperm.xlu0 %1957, %v1832
  %v1959 = vpop.permute.xlu0 %1958
  %1962 = vset.pattern.permute.xlu0 0
  %1963 = vperm.xlu0 %1962, %v1833
  %v1964 = vpop.permute.xlu0 %1963
  %1967 = vset.pattern.permute.xlu0 0
  %1968 = vperm.xlu0 %1967, %v1834
  %v1969 = vpop.permute.xlu0 %1968
  %1972 = vset.pattern.permute.xlu0 0
  %1973 = vperm.xlu0 %1972, %v1835
  %v1974 = vpop.permute.xlu0 %1973
  %1977 = vset.pattern.permute.xlu0 0
  %1978 = vperm.xlu0 %1977, %v1836
  %v1979 = vpop.permute.xlu0 %1978
  %1982 = vset.pattern.permute.xlu0 0
  %1983 = vperm.xlu0 %1982, %v1837
  %v1984 = vpop.permute.xlu0 %1983
  %1987 = vset.pattern.permute.xlu0 0
  %1988 = vperm.xlu0 %1987, %v1838
  %v1989 = vpop.permute.xlu0 %1988
  %1992 = vset.pattern.permute.xlu0 0
  %1993 = vperm.xlu0 %1992, %v1839
  %v1994 = vpop.permute.xlu0 %1993
  %1997 = vset.pattern.permute.xlu0 0
  %1998 = vperm.xlu0 %1997, %v1840
  %v1999 = vpop.permute.xlu0 %1998
  %2002 = vset.pattern.permute.xlu0 0
  %2003 = vperm.xlu0 %2002, %v1841
  %v2004 = vpop.permute.xlu0 %2003
  %2007 = vset.pattern.permute.xlu0 0
  %2008 = vperm.xlu0 %2007, %v1842
  %v2009 = vpop.permute.xlu0 %2008
  %2012 = vset.pattern.permute.xlu0 0
  %2013 = vperm.xlu0 %2012, %v1843
  %v2014 = vpop.permute.xlu0 %2013
  %2017 = vset.pattern.permute.xlu0 0
  %2018 = vperm.xlu0 %2017, %v1844
  %v2019 = vpop.permute.xlu0 %2018
  %2022 = vset.pattern.permute.xlu0 0
  %2023 = vperm.xlu0 %2022, %v1845
  %v2024 = vpop.permute.xlu0 %2023
  %2027 = vset.pattern.permute.xlu0 0
  %2028 = vperm.xlu0 %2027, %v1846
  %v2029 = vpop.permute.xlu0 %2028
  %2032 = vset.pattern.permute.xlu0 0
  %2033 = vperm.xlu0 %2032, %v1847
  %v2034 = vpop.permute.xlu0 %2033
  %2037 = vset.pattern.permute.xlu0 0
  %2038 = vperm.xlu0 %2037, %v1848
  %v2039 = vpop.permute.xlu0 %2038
  %2042 = vset.pattern.permute.xlu0 0
  %2043 = vperm.xlu0 %2042, %v1849
  %v2044 = vpop.permute.xlu0 %2043
  %2047 = vset.pattern.permute.xlu0 0
  %2048 = vperm.xlu0 %2047, %v1850
  %v2049 = vpop.permute.xlu0 %2048
  %2052 = vset.pattern.permute.xlu0 0
  %2053 = vperm.xlu0 %2052, %v1851
  %v2054 = vpop.permute.xlu0 %2053
  %2057 = vset.pattern.permute.xlu0 0
  %2058 = vperm.xlu0 %2057, %v1852
  %v2059 = vpop.permute.xlu0 %2058
  %2062 = vset.pattern.permute.xlu0 0
  %2063 = vperm.xlu0 %2062, %v1853
  %v2064 = vpop.permute.xlu0 %2063
  %2067 = vset.pattern.permute.xlu0 0
  %2068 = vperm.xlu0 %2067, %v1854
  %v2069 = vpop.permute.xlu0 %2068
  %2072 = vset.pattern.permute.xlu0 0
  %2073 = vperm.xlu0 %2072, %v1855
  %v2074 = vpop.permute.xlu0 %2073
  %2077 = vset.pattern.permute.xlu0 0
  %2078 = vperm.xlu0 %2077, %v1856
  %v2079 = vpop.permute.xlu0 %2078
  %2082 = vset.pattern.permute.xlu0 0
  %2083 = vperm.xlu0 %2082, %v1857
  %v2084 = vpop.permute.xlu0 %2083
  %2087 = vset.pattern.permute.xlu0 0
  %2088 = vperm.xlu0 %2087, %v1858
  %v2089 = vpop.permute.xlu0 %2088
  %2092 = vset.pattern.permute.xlu0 0
  %2093 = vperm.xlu0 %2092, %v1859
  %v2094 = vpop.permute.xlu0 %2093
  %2097 = vset.pattern.permute.xlu0 0
  %2098 = vperm.xlu0 %2097, %v1860
  %v2099 = vpop.permute.xlu0 %2098
  %2102 = vset.pattern.permute.xlu0 0
  %2103 = vperm.xlu0 %2102, %v1861
  %v2104 = vpop.permute.xlu0 %2103
  %2107 = vset.pattern.permute.xlu0 0
  %2108 = vperm.xlu0 %2107, %v1862
  %v2109 = vpop.permute.xlu0 %2108
  %2112 = vset.pattern.permute.xlu0 0
  %2113 = vperm.xlu0 %2112, %v1863
  %v2114 = vpop.permute.xlu0 %2113
  %2117 = vset.pattern.permute.xlu0 0
  %2118 = vperm.xlu0 %2117, %v1864
  %v2119 = vpop.permute.xlu0 %2118
  %2122 = vset.pattern.permute.xlu0 0
  %2123 = vperm.xlu0 %2122, %v1865
  %v2124 = vpop.permute.xlu0 %2123
  %2127 = vset.pattern.permute.xlu0 0
  %2128 = vperm.xlu0 %2127, %v1866
  %v2129 = vpop.permute.xlu0 %2128
  %2132 = vset.pattern.permute.xlu0 0
  %2133 = vperm.xlu0 %2132, %v1867
  %v2134 = vpop.permute.xlu0 %2133
  %2137 = vset.pattern.permute.xlu0 0
  %2138 = vperm.xlu0 %2137, %v1868
  %v2139 = vpop.permute.xlu0 %2138
  %2142 = vset.pattern.permute.xlu0 0
  %2143 = vperm.xlu0 %2142, %v1869
  %v2144 = vpop.permute.xlu0 %2143
  %2147 = vset.pattern.permute.xlu0 0
  %2148 = vperm.xlu0 %2147, %v1870
  %v2149 = vpop.permute.xlu0 %2148
  %2152 = vset.pattern.permute.xlu0 0
  %2153 = vperm.xlu0 %2152, %v1871
  %v2154 = vpop.permute.xlu0 %2153
  %2157 = vset.pattern.permute.xlu0 0
  %2158 = vperm.xlu0 %2157, %v1872
  %v2159 = vpop.permute.xlu0 %2158
  %2162 = vset.pattern.permute.xlu0 0
  %2163 = vperm.xlu0 %2162, %v1873
  %v2164 = vpop.permute.xlu0 %2163
  %2167 = vset.pattern.permute.xlu0 0
  %2168 = vperm.xlu0 %2167, %v1874
  %v2169 = vpop.permute.xlu0 %2168
  %2172 = vset.pattern.permute.xlu0 0
  %2173 = vperm.xlu0 %2172, %v1875
  %v2174 = vpop.permute.xlu0 %2173
  %2177 = vset.pattern.permute.xlu0 0
  %2178 = vperm.xlu0 %2177, %v1876
  %v2179 = vpop.permute.xlu0 %2178
  %2182 = vset.pattern.permute.xlu0 0
  %2183 = vperm.xlu0 %2182, %v1877
  %v2184 = vpop.permute.xlu0 %2183
  %2187 = vset.pattern.permute.xlu0 0
  %2188 = vperm.xlu0 %2187, %v1878
  %v2189 = vpop.permute.xlu0 %2188
  %2192 = vset.pattern.permute.xlu0 0
  %2193 = vperm.xlu0 %2192, %v1879
  %v2194 = vpop.permute.xlu0 %2193
  %2197 = vset.pattern.permute.xlu0 0
  %2198 = vperm.xlu0 %2197, %v1880
  %v2199 = vpop.permute.xlu0 %2198
  %v2265 = vunpack.c.l.b16 %v1753
  %v2266 = vunpack.c.l.b16 %v1754
  %v2267 = vunpack.c.l.b16 %v1755
  %v2268 = vunpack.c.l.b16 %v1756
  %v2269 = vunpack.c.l.b16 %v1757
  %v2270 = vunpack.c.l.b16 %v1758
  %v2271 = vunpack.c.l.b16 %v1759
  %v2272 = vunpack.c.l.b16 %v1760
  %v2273 = vunpack.c.l.b16 %v1761
  %v2274 = vunpack.c.l.b16 %v1762
  %v2275 = vunpack.c.l.b16 %v1763
  %v2276 = vunpack.c.l.b16 %v1764
  %v2277 = vunpack.c.l.b16 %v1765
  %v2278 = vunpack.c.l.b16 %v1766
  %v2279 = vunpack.c.l.b16 %v1767
  %v2280 = vunpack.c.l.b16 %v1768
  %v2281 = vunpack.c.l.b16 %v1769
  %v2282 = vunpack.c.l.b16 %v1770
  %v2283 = vunpack.c.l.b16 %v1771
  %v2284 = vunpack.c.l.b16 %v1772
  %v2285 = vunpack.c.l.b16 %v1773
  %v2286 = vunpack.c.l.b16 %v1774
  %v2287 = vunpack.c.l.b16 %v1775
  %v2288 = vunpack.c.l.b16 %v1776
  %v2289 = vunpack.c.l.b16 %v1777
  %v2290 = vunpack.c.l.b16 %v1778
  %v2291 = vunpack.c.l.b16 %v1779
  %v2292 = vunpack.c.l.b16 %v1780
  %v2293 = vunpack.c.l.b16 %v1781
  %v2294 = vunpack.c.l.b16 %v1782
  %v2295 = vunpack.c.l.b16 %v1783
  %v2296 = vunpack.c.l.b16 %v1784
  %v2297 = vunpack.c.l.b16 %v1785
  %v2298 = vunpack.c.l.b16 %v1786
  %v2299 = vunpack.c.l.b16 %v1787
  %v2300 = vunpack.c.l.b16 %v1788
  %v2301 = vunpack.c.l.b16 %v1789
  %v2302 = vunpack.c.l.b16 %v1790
  %v2303 = vunpack.c.l.b16 %v1791
  %v2304 = vunpack.c.l.b16 %v1792
  %v2305 = vunpack.c.l.b16 %v1793
  %v2306 = vunpack.c.l.b16 %v1794
  %v2307 = vunpack.c.l.b16 %v1795
  %v2308 = vunpack.c.l.b16 %v1796
  %v2309 = vunpack.c.l.b16 %v1797
  %v2310 = vunpack.c.l.b16 %v1798
  %v2311 = vunpack.c.l.b16 %v1799
  %v2312 = vunpack.c.l.b16 %v1800
  %v2313 = vunpack.c.l.b16 %v1801
  %v2314 = vunpack.c.l.b16 %v1802
  %v2315 = vunpack.c.l.b16 %v1803
  %v2316 = vunpack.c.l.b16 %v1804
  %v2317 = vunpack.c.l.b16 %v1805
  %v2318 = vunpack.c.l.b16 %v1806
  %v2319 = vunpack.c.l.b16 %v1807
  %v2320 = vunpack.c.l.b16 %v1808
  %v2321 = vunpack.c.l.b16 %v1809
  %v2322 = vunpack.c.l.b16 %v1810
  %v2323 = vunpack.c.l.b16 %v1811
  %v2324 = vunpack.c.l.b16 %v1812
  %v2325 = vunpack.c.l.b16 %v1813
  %v2326 = vunpack.c.l.b16 %v1814
  %v2327 = vunpack.c.l.b16 %v1815
  %v2328 = vunpack.c.l.b16 %v1816
  %v2329 = vpack.c.b16 %v2266, %v2265
  %v2330 = vpack.c.b16 %v2268, %v2267
  %v2331 = vpack.c.b16 %v2270, %v2269
  %v2332 = vpack.c.b16 %v2272, %v2271
  %v2333 = vpack.c.b16 %v2274, %v2273
  %v2334 = vpack.c.b16 %v2276, %v2275
  %v2335 = vpack.c.b16 %v2278, %v2277
  %v2336 = vpack.c.b16 %v2280, %v2279
  %v2337 = vpack.c.b16 %v2282, %v2281
  %v2338 = vpack.c.b16 %v2284, %v2283
  %v2339 = vpack.c.b16 %v2286, %v2285
  %v2340 = vpack.c.b16 %v2288, %v2287
  %v2341 = vpack.c.b16 %v2290, %v2289
  %v2342 = vpack.c.b16 %v2292, %v2291
  %v2343 = vpack.c.b16 %v2294, %v2293
  %v2344 = vpack.c.b16 %v2296, %v2295
  %v2345 = vpack.c.b16 %v2298, %v2297
  %v2346 = vpack.c.b16 %v2300, %v2299
  %v2347 = vpack.c.b16 %v2302, %v2301
  %v2348 = vpack.c.b16 %v2304, %v2303
  %v2349 = vpack.c.b16 %v2306, %v2305
  %v2350 = vpack.c.b16 %v2308, %v2307
  %v2351 = vpack.c.b16 %v2310, %v2309
  %v2352 = vpack.c.b16 %v2312, %v2311
  %v2353 = vpack.c.b16 %v2314, %v2313
  %v2354 = vpack.c.b16 %v2316, %v2315
  %v2355 = vpack.c.b16 %v2318, %v2317
  %v2356 = vpack.c.b16 %v2320, %v2319
  %v2357 = vpack.c.b16 %v2322, %v2321
  %v2358 = vpack.c.b16 %v2324, %v2323
  %v2359 = vpack.c.b16 %v2326, %v2325
  %v2360 = vpack.c.b16 %v2328, %v2327
  %v2362 = vsel %vm628, %v2329, 0
  %v2365 = vsel %vm628, %v2330, 0
  %v2368 = vsel %vm628, %v2331, 0
  %v2371 = vsel %vm628, %v2332, 0
  %v2374 = vsel %vm628, %v2333, 0
  %v2377 = vsel %vm628, %v2334, 0
  %v2380 = vsel %vm628, %v2335, 0
  %v2383 = vsel %vm628, %v2336, 0
  %v2386 = vsel %vm628, %v2337, 0
  %v2389 = vsel %vm628, %v2338, 0
  %v2392 = vsel %vm628, %v2339, 0
  %v2395 = vsel %vm628, %v2340, 0
  %v2398 = vsel %vm628, %v2341, 0
  %v2401 = vsel %vm628, %v2342, 0
  %v2404 = vsel %vm628, %v2343, 0
  %v2407 = vsel %vm628, %v2344, 0
  %v2410 = vsel %vm628, %v2345, 0
  %v2413 = vsel %vm628, %v2346, 0
  %v2416 = vsel %vm628, %v2347, 0
  %v2419 = vsel %vm628, %v2348, 0
  %v2422 = vsel %vm628, %v2349, 0
  %v2425 = vsel %vm628, %v2350, 0
  %v2428 = vsel %vm628, %v2351, 0
  %v2431 = vsel %vm628, %v2352, 0
  %v2434 = vsel %vm628, %v2353, 0
  %v2437 = vsel %vm628, %v2354, 0
  %v2440 = vsel %vm628, %v2355, 0
  %v2443 = vsel %vm628, %v2356, 0
  %v2446 = vsel %vm628, %v2357, 0
  %v2449 = vsel %vm628, %v2358, 0
  %v2452 = vsel %vm628, %v2359, 0
  %v2455 = vsel %vm628, %v2360, 0
  %2457 = vmatprep.subr.bf16.mxu0 0
  %2458 = vmatpush1.bf16.msra.mxu0 %v1749
  %2459 = vmatprep.subr.bf16.mxu0 0
  %2460 = vmatpush1.bf16.msra.mxu0 %v1750
  %2461 = vmatprep.subr.bf16.mxu0 0
  %2462 = vmatpush1.bf16.msra.mxu0 %v1751
  %2463 = vmatprep.subr.bf16.mxu0 0
  %2464 = vmatpush1.bf16.msra.mxu0 %v1752
  %2465 = vmatprep.subr.bf16.mxu0 0
  %2466 = vmatpush1.bf16.msra.mxu0 0
  %2467 = vmatprep.subr.bf16.mxu0 0
  %2468 = vmatpush1.bf16.msra.mxu0 0
  %2469 = vmatprep.subr.bf16.mxu0 0
  %2470 = vmatpush1.bf16.msra.mxu0 0
  %2471 = vmatprep.subr.bf16.mxu0 0
  %2472 = vmatpush1.bf16.msra.mxu0 0
  %2473 = vmatprep.subr.bf16.mxu0 0
  %2474 = vmatpush1.bf16.msra.mxu0 0
  %2475 = vmatprep.subr.bf16.mxu0 0
  %2476 = vmatpush1.bf16.msra.mxu0 0
  %2477 = vmatprep.subr.bf16.mxu0 0
  %2478 = vmatpush1.bf16.msra.mxu0 0
  %2479 = vmatprep.subr.bf16.mxu0 0
  %2480 = vmatpush1.bf16.msra.mxu0 0
  %2481 = vmatprep.subr.bf16.mxu0 0
  %2482 = vmatpush1.bf16.msra.mxu0 0
  %2483 = vmatprep.subr.bf16.mxu0 0
  %2484 = vmatpush1.bf16.msra.mxu0 0
  %2485 = vmatprep.subr.bf16.mxu0 0
  %2486 = vmatpush1.bf16.msra.mxu0 0
  %2487 = vmatprep.subr.bf16.mxu0 0
  %2488 = vmatpush1.bf16.msra.mxu0 0
  %2489 = vmatprep.mubr.bf16.mxu0 0
  %2490 = vmatmul.mubr.bf16.gmra.mrb[0].mxu0 %v2362
  %v2491 = vpop.f32.mrb[0].mxu0
  %v2492 = vadd.f32 %v1884, %v2491
  %v2493 = vpop.f32.mrb[0].mxu0
  %v2494 = vpop.f32.mrb[0].mxu0
  %v2495 = vadd.f32 %v1889, %v2494
  %v2496 = vpop.f32.mrb[0].mxu0
  %2497 = vmatprep.mubr.bf16.mxu0 0
  %2498 = vmatmul.mubr.bf16.gmra.mrb[0].mxu0 %v2365
  %v2499 = vpop.f32.mrb[0].mxu0
  %v2500 = vadd.f32 %v1894, %v2499
  %v2501 = vpop.f32.mrb[0].mxu0
  %v2502 = vpop.f32.mrb[0].mxu0
  %v2503 = vadd.f32 %v1899, %v2502
  %v2504 = vpop.f32.mrb[0].mxu0
  %2505 = vmatprep.mubr.bf16.mxu0 0
  %2506 = vmatmul.mubr.bf16.gmra.mrb[0].mxu0 %v2368
  %v2507 = vpop.f32.mrb[0].mxu0
  %v2508 = vadd.f32 %v1904, %v2507
  %v2509 = vpop.f32.mrb[0].mxu0
  %v2510 = vpop.f32.mrb[0].mxu0
  %v2511 = vadd.f32 %v1909, %v2510
  %v2512 = vpop.f32.mrb[0].mxu0
  %2513 = vmatprep.mubr.bf16.mxu0 0
  %2514 = vmatmul.mubr.bf16.gmra.mrb[0].mxu0 %v2371
  %v2515 = vpop.f32.mrb[0].mxu0
  %v2516 = vadd.f32 %v1914, %v2515
  %v2517 = vpop.f32.mrb[0].mxu0
  %v2518 = vpop.f32.mrb[0].mxu0
  %v2519 = vadd.f32 %v1919, %v2518
  %v2520 = vpop.f32.mrb[0].mxu0
  %2521 = vmatprep.mubr.bf16.mxu0 0
  %2522 = vmatmul.mubr.bf16.gmra.mrb[0].mxu0 %v2374
  %v2523 = vpop.f32.mrb[0].mxu0
  %v2524 = vadd.f32 %v1924, %v2523
  %v2525 = vpop.f32.mrb[0].mxu0
  %v2526 = vpop.f32.mrb[0].mxu0
  %v2527 = vadd.f32 %v1929, %v2526
  %v2528 = vpop.f32.mrb[0].mxu0
  %2529 = vmatprep.mubr.bf16.mxu0 0
  %2530 = vmatmul.mubr.bf16.gmra.mrb[0].mxu0 %v2377
  %v2531 = vpop.f32.mrb[0].mxu0
  %v2532 = vadd.f32 %v1934, %v2531
  %v2533 = vpop.f32.mrb[0].mxu0
  %v2534 = vpop.f32.mrb[0].mxu0
  %v2535 = vadd.f32 %v1939, %v2534
  %v2536 = vpop.f32.mrb[0].mxu0
  %2537 = vmatprep.mubr.bf16.mxu0 0
  %2538 = vmatmul.mubr.bf16.gmra.mrb[0].mxu0 %v2380
  %v2539 = vpop.f32.mrb[0].mxu0
  %v2540 = vadd.f32 %v1944, %v2539
  %v2541 = vpop.f32.mrb[0].mxu0
  %v2542 = vpop.f32.mrb[0].mxu0
  %v2543 = vadd.f32 %v1949, %v2542
  %v2544 = vpop.f32.mrb[0].mxu0
  %2545 = vmatprep.mubr.bf16.mxu0 0
  %2546 = vmatmul.mubr.bf16.gmra.mrb[0].mxu0 %v2383
  %v2547 = vpop.f32.mrb[0].mxu0
  %v2548 = vadd.f32 %v1954, %v2547
  %v2549 = vpop.f32.mrb[0].mxu0
  %v2550 = vpop.f32.mrb[0].mxu0
  %v2551 = vadd.f32 %v1959, %v2550
  %v2552 = vpop.f32.mrb[0].mxu0
  %2553 = vmatprep.mubr.bf16.mxu0 0
  %2554 = vmatmul.mubr.bf16.gmra.mrb[0].mxu0 %v2386
  %v2555 = vpop.f32.mrb[0].mxu0
  %v2556 = vadd.f32 %v1964, %v2555
  %v2557 = vpop.f32.mrb[0].mxu0
  %v2558 = vpop.f32.mrb[0].mxu0
  %v2559 = vadd.f32 %v1969, %v2558
  %v2560 = vpop.f32.mrb[0].mxu0
  %2561 = vmatprep.mubr.bf16.mxu0 0
  %2562 = vmatmul.mubr.bf16.gmra.mrb[0].mxu0 %v2389
  %v2563 = vpop.f32.mrb[0].mxu0
  %v2564 = vadd.f32 %v1974, %v2563
  %v2565 = vpop.f32.mrb[0].mxu0
  %v2566 = vpop.f32.mrb[0].mxu0
  %v2567 = vadd.f32 %v1979, %v2566
  %v2568 = vpop.f32.mrb[0].mxu0
  %2569 = vmatprep.mubr.bf16.mxu0 0
  %2570 = vmatmul.mubr.bf16.gmra.mrb[0].mxu0 %v2392
  %v2571 = vpop.f32.mrb[0].mxu0
  %v2572 = vadd.f32 %v1984, %v2571
  %v2573 = vpop.f32.mrb[0].mxu0
  %v2574 = vpop.f32.mrb[0].mxu0
  %v2575 = vadd.f32 %v1989, %v2574
  %v2576 = vpop.f32.mrb[0].mxu0
  %2577 = vmatprep.mubr.bf16.mxu0 0
  %2578 = vmatmul.mubr.bf16.gmra.mrb[0].mxu0 %v2395
  %v2579 = vpop.f32.mrb[0].mxu0
  %v2580 = vadd.f32 %v1994, %v2579
  %v2581 = vpop.f32.mrb[0].mxu0
  %v2582 = vpop.f32.mrb[0].mxu0
  %v2583 = vadd.f32 %v1999, %v2582
  %v2584 = vpop.f32.mrb[0].mxu0
  %2585 = vmatprep.mubr.bf16.mxu0 0
  %2586 = vmatmul.mubr.bf16.gmra.mrb[0].mxu0 %v2398
  %v2587 = vpop.f32.mrb[0].mxu0
  %v2588 = vadd.f32 %v2004, %v2587
  %v2589 = vpop.f32.mrb[0].mxu0
  %v2590 = vpop.f32.mrb[0].mxu0
  %v2591 = vadd.f32 %v2009, %v2590
  %v2592 = vpop.f32.mrb[0].mxu0
  %2593 = vmatprep.mubr.bf16.mxu0 0
  %2594 = vmatmul.mubr.bf16.gmra.mrb[0].mxu0 %v2401
  %v2595 = vpop.f32.mrb[0].mxu0
  %v2596 = vadd.f32 %v2014, %v2595
  %v2597 = vpop.f32.mrb[0].mxu0
  %v2598 = vpop.f32.mrb[0].mxu0
  %v2599 = vadd.f32 %v2019, %v2598
  %v2600 = vpop.f32.mrb[0].mxu0
  %2601 = vmatprep.mubr.bf16.mxu0 0
  %2602 = vmatmul.mubr.bf16.gmra.mrb[0].mxu0 %v2404
  %v2603 = vpop.f32.mrb[0].mxu0
  %v2604 = vadd.f32 %v2024, %v2603
  %v2605 = vpop.f32.mrb[0].mxu0
  %v2606 = vpop.f32.mrb[0].mxu0
  %v2607 = vadd.f32 %v2029, %v2606
  %v2608 = vpop.f32.mrb[0].mxu0
  %2609 = vmatprep.mubr.bf16.mxu0 0
  %2610 = vmatmul.mubr.bf16.gmra.mrb[0].mxu0 %v2407
  %v2611 = vpop.f32.mrb[0].mxu0
  %v2612 = vadd.f32 %v2034, %v2611
  %v2613 = vpop.f32.mrb[0].mxu0
  %v2614 = vpop.f32.mrb[0].mxu0
  %v2615 = vadd.f32 %v2039, %v2614
  %v2616 = vpop.f32.mrb[0].mxu0
  %2617 = vmatprep.mubr.bf16.mxu0 0
  %2618 = vmatmul.mubr.bf16.gmra.mrb[0].mxu0 %v2410
  %v2619 = vpop.f32.mrb[0].mxu0
  %v2620 = vadd.f32 %v2044, %v2619
  %v2621 = vpop.f32.mrb[0].mxu0
  %v2622 = vpop.f32.mrb[0].mxu0
  %v2623 = vadd.f32 %v2049, %v2622
  %v2624 = vpop.f32.mrb[0].mxu0
  %2625 = vmatprep.mubr.bf16.mxu0 0
  %2626 = vmatmul.mubr.bf16.gmra.mrb[0].mxu0 %v2413
  %v2627 = vpop.f32.mrb[0].mxu0
  %v2628 = vadd.f32 %v2054, %v2627
  %v2629 = vpop.f32.mrb[0].mxu0
  %v2630 = vpop.f32.mrb[0].mxu0
  %v2631 = vadd.f32 %v2059, %v2630
  %v2632 = vpop.f32.mrb[0].mxu0
  %2633 = vmatprep.mubr.bf16.mxu0 0
  %2634 = vmatmul.mubr.bf16.gmra.mrb[0].mxu0 %v2416
  %v2635 = vpop.f32.mrb[0].mxu0
  %v2636 = vadd.f32 %v2064, %v2635
  %v2637 = vpop.f32.mrb[0].mxu0
  %v2638 = vpop.f32.mrb[0].mxu0
  %v2639 = vadd.f32 %v2069, %v2638
  %v2640 = vpop.f32.mrb[0].mxu0
  %2641 = vmatprep.mubr.bf16.mxu0 0
  %2642 = vmatmul.mubr.bf16.gmra.mrb[0].mxu0 %v2419
  %v2643 = vpop.f32.mrb[0].mxu0
  %v2644 = vadd.f32 %v2074, %v2643
  %v2645 = vpop.f32.mrb[0].mxu0
  %v2646 = vpop.f32.mrb[0].mxu0
  %v2647 = vadd.f32 %v2079, %v2646
  %v2648 = vpop.f32.mrb[0].mxu0
  %2649 = vmatprep.mubr.bf16.mxu0 0
  %2650 = vmatmul.mubr.bf16.gmra.mrb[0].mxu0 %v2422
  %v2651 = vpop.f32.mrb[0].mxu0
  %v2652 = vadd.f32 %v2084, %v2651
  %v2653 = vpop.f32.mrb[0].mxu0
  %v2654 = vpop.f32.mrb[0].mxu0
  %v2655 = vadd.f32 %v2089, %v2654
  %v2656 = vpop.f32.mrb[0].mxu0
  %2657 = vmatprep.mubr.bf16.mxu0 0
  %2658 = vmatmul.mubr.bf16.gmra.mrb[0].mxu0 %v2425
  %v2659 = vpop.f32.mrb[0].mxu0
  %v2660 = vadd.f32 %v2094, %v2659
  %v2661 = vpop.f32.mrb[0].mxu0
  %v2662 = vpop.f32.mrb[0].mxu0
  %v2663 = vadd.f32 %v2099, %v2662
  %v2664 = vpop.f32.mrb[0].mxu0
  %2665 = vmatprep.mubr.bf16.mxu0 0
  %2666 = vmatmul.mubr.bf16.gmra.mrb[0].mxu0 %v2428
  %v2667 = vpop.f32.mrb[0].mxu0
  %v2668 = vadd.f32 %v2104, %v2667
  %v2669 = vpop.f32.mrb[0].mxu0
  %v2670 = vpop.f32.mrb[0].mxu0
  %v2671 = vadd.f32 %v2109, %v2670
  %v2672 = vpop.f32.mrb[0].mxu0
  %2673 = vmatprep.mubr.bf16.mxu0 0
  %2674 = vmatmul.mubr.bf16.gmra.mrb[0].mxu0 %v2431
  %v2675 = vpop.f32.mrb[0].mxu0
  %v2676 = vadd.f32 %v2114, %v2675
  %v2677 = vpop.f32.mrb[0].mxu0
  %v2678 = vpop.f32.mrb[0].mxu0
  %v2679 = vadd.f32 %v2119, %v2678
  %v2680 = vpop.f32.mrb[0].mxu0
  %2681 = vmatprep.mubr.bf16.mxu0 0
  %2682 = vmatmul.mubr.bf16.gmra.mrb[0].mxu0 %v2434
  %v2683 = vpop.f32.mrb[0].mxu0
  %v2684 = vadd.f32 %v2124, %v2683
  %v2685 = vpop.f32.mrb[0].mxu0
  %v2686 = vpop.f32.mrb[0].mxu0
  %v2687 = vadd.f32 %v2129, %v2686
  %v2688 = vpop.f32.mrb[0].mxu0
  %2689 = vmatprep.mubr.bf16.mxu0 0
  %2690 = vmatmul.mubr.bf16.gmra.mrb[0].mxu0 %v2437
  %v2691 = vpop.f32.mrb[0].mxu0
  %v2692 = vadd.f32 %v2134, %v2691
  %v2693 = vpop.f32.mrb[0].mxu0
  %v2694 = vpop.f32.mrb[0].mxu0
  %v2695 = vadd.f32 %v2139, %v2694
  %v2696 = vpop.f32.mrb[0].mxu0
  %2697 = vmatprep.mubr.bf16.mxu0 0
  %2698 = vmatmul.mubr.bf16.gmra.mrb[0].mxu0 %v2440
  %v2699 = vpop.f32.mrb[0].mxu0
  %v2700 = vadd.f32 %v2144, %v2699
  %v2701 = vpop.f32.mrb[0].mxu0
  %v2702 = vpop.f32.mrb[0].mxu0
  %v2703 = vadd.f32 %v2149, %v2702
  %v2704 = vpop.f32.mrb[0].mxu0
  %2705 = vmatprep.mubr.bf16.mxu0 0
  %2706 = vmatmul.mubr.bf16.gmra.mrb[0].mxu0 %v2443
  %v2707 = vpop.f32.mrb[0].mxu0
  %v2708 = vadd.f32 %v2154, %v2707
  %v2709 = vpop.f32.mrb[0].mxu0
  %v2710 = vpop.f32.mrb[0].mxu0
  %v2711 = vadd.f32 %v2159, %v2710
  %v2712 = vpop.f32.mrb[0].mxu0
  %2713 = vmatprep.mubr.bf16.mxu0 0
  %2714 = vmatmul.mubr.bf16.gmra.mrb[0].mxu0 %v2446
  %v2715 = vpop.f32.mrb[0].mxu0
  %v2716 = vadd.f32 %v2164, %v2715
  %v2717 = vpop.f32.mrb[0].mxu0
  %v2718 = vpop.f32.mrb[0].mxu0
  %v2719 = vadd.f32 %v2169, %v2718
  %v2720 = vpop.f32.mrb[0].mxu0
  %2721 = vmatprep.mubr.bf16.mxu0 0
  %2722 = vmatmul.mubr.bf16.gmra.mrb[0].mxu0 %v2449
  %v2723 = vpop.f32.mrb[0].mxu0
  %v2724 = vadd.f32 %v2174, %v2723
  %v2725 = vpop.f32.mrb[0].mxu0
  %v2726 = vpop.f32.mrb[0].mxu0
  %v2727 = vadd.f32 %v2179, %v2726
  %v2728 = vpop.f32.mrb[0].mxu0
  %2729 = vmatprep.mubr.bf16.mxu0 0
  %2730 = vmatmul.mubr.bf16.gmra.mrb[0].mxu0 %v2452
  %v2731 = vpop.f32.mrb[0].mxu0
  %v2732 = vadd.f32 %v2184, %v2731
  %v2733 = vpop.f32.mrb[0].mxu0
  %v2734 = vpop.f32.mrb[0].mxu0
  %v2735 = vadd.f32 %v2189, %v2734
  %v2736 = vpop.f32.mrb[0].mxu0
  %2737 = vmatprep.mubr.bf16.mxu0 0
  %2738 = vmatmul.mubr.bf16.gmra.mrb[0].mxu0 %v2455
  %v2739 = vpop.f32.mrb[0].mxu0
  %v2740 = vadd.f32 %v2194, %v2739
  %v2741 = vpop.f32.mrb[0].mxu0
  %v2742 = vpop.f32.mrb[0].mxu0
  %v2743 = vadd.f32 %v2199, %v2742
  %v2744 = vpop.f32.mrb[0].mxu0
  %2745 = vdwg.mxu0
  %v2746 = vmax.f32 %v2492, 0.0
  %v2747 = vmax.f32 %v2495, 0.0
  %v2748 = vmax.f32 %v2500, 0.0
  %v2749 = vmax.f32 %v2503, 0.0
  %v2750 = vmax.f32 %v2508, 0.0
  %v2751 = vmax.f32 %v2511, 0.0
  %v2752 = vmax.f32 %v2516, 0.0
  %v2753 = vmax.f32 %v2519, 0.0
  %v2754 = vmax.f32 %v2524, 0.0
  %v2755 = vmax.f32 %v2527, 0.0
  %v2756 = vmax.f32 %v2532, 0.0
  %v2757 = vmax.f32 %v2535, 0.0
  %v2758 = vmax.f32 %v2540, 0.0
  %v2759 = vmax.f32 %v2543, 0.0
  %v2760 = vmax.f32 %v2548, 0.0
  %v2761 = vmax.f32 %v2551, 0.0
  %v2762 = vmax.f32 %v2556, 0.0
  %v2763 = vmax.f32 %v2559, 0.0
  %v2764 = vmax.f32 %v2564, 0.0
  %v2765 = vmax.f32 %v2567, 0.0
  %v2766 = vmax.f32 %v2572, 0.0
  %v2767 = vmax.f32 %v2575, 0.0
  %v2768 = vmax.f32 %v2580, 0.0
  %v2769 = vmax.f32 %v2583, 0.0
  %v2770 = vmax.f32 %v2588, 0.0
  %v2771 = vmax.f32 %v2591, 0.0
  %v2772 = vmax.f32 %v2596, 0.0
  %v2773 = vmax.f32 %v2599, 0.0
  %v2774 = vmax.f32 %v2604, 0.0
  %v2775 = vmax.f32 %v2607, 0.0
  %v2776 = vmax.f32 %v2612, 0.0
  %v2777 = vmax.f32 %v2615, 0.0
  %v2778 = vmax.f32 %v2620, 0.0
  %v2779 = vmax.f32 %v2623, 0.0
  %v2780 = vmax.f32 %v2628, 0.0
  %v2781 = vmax.f32 %v2631, 0.0
  %v2782 = vmax.f32 %v2636, 0.0
  %v2783 = vmax.f32 %v2639, 0.0
  %v2784 = vmax.f32 %v2644, 0.0
  %v2785 = vmax.f32 %v2647, 0.0
  %v2786 = vmax.f32 %v2652, 0.0
  %v2787 = vmax.f32 %v2655, 0.0
  %v2788 = vmax.f32 %v2660, 0.0
  %v2789 = vmax.f32 %v2663, 0.0
  %v2790 = vmax.f32 %v2668, 0.0
  %v2791 = vmax.f32 %v2671, 0.0
  %v2792 = vmax.f32 %v2676, 0.0
  %v2793 = vmax.f32 %v2679, 0.0
  %v2794 = vmax.f32 %v2684, 0.0
  %v2795 = vmax.f32 %v2687, 0.0
  %v2796 = vmax.f32 %v2692, 0.0
  %v2797 = vmax.f32 %v2695, 0.0
  %v2798 = vmax.f32 %v2700, 0.0
  %v2799 = vmax.f32 %v2703, 0.0
  %v2800 = vmax.f32 %v2708, 0.0
  %v2801 = vmax.f32 %v2711, 0.0
  %v2802 = vmax.f32 %v2716, 0.0
  %v2803 = vmax.f32 %v2719, 0.0
  %v2804 = vmax.f32 %v2724, 0.0
  %v2805 = vmax.f32 %v2727, 0.0
  %v2806 = vmax.f32 %v2732, 0.0
  %v2807 = vmax.f32 %v2735, 0.0
  %v2808 = vmax.f32 %v2740, 0.0
  %v2809 = vmax.f32 %v2743, 0.0
  %v2810 = vpack.c.bf16 %v2747, %v2746
  %v2811 = vpack.c.bf16 %v2749, %v2748
  %v2812 = vpack.c.bf16 %v2751, %v2750
  %v2813 = vpack.c.bf16 %v2753, %v2752
  %v2814 = vpack.c.bf16 %v2755, %v2754
  %v2815 = vpack.c.bf16 %v2757, %v2756
  %v2816 = vpack.c.bf16 %v2759, %v2758
  %v2817 = vpack.c.bf16 %v2761, %v2760
  %v2818 = vpack.c.bf16 %v2763, %v2762
  %v2819 = vpack.c.bf16 %v2765, %v2764
  %v2820 = vpack.c.bf16 %v2767, %v2766
  %v2821 = vpack.c.bf16 %v2769, %v2768
  %v2822 = vpack.c.bf16 %v2771, %v2770
  %v2823 = vpack.c.bf16 %v2773, %v2772
  %v2824 = vpack.c.bf16 %v2775, %v2774
  %v2825 = vpack.c.bf16 %v2777, %v2776
  %v2826 = vpack.c.bf16 %v2779, %v2778
  %v2827 = vpack.c.bf16 %v2781, %v2780
  %v2828 = vpack.c.bf16 %v2783, %v2782
  %v2829 = vpack.c.bf16 %v2785, %v2784
  %v2830 = vpack.c.bf16 %v2787, %v2786
  %v2831 = vpack.c.bf16 %v2789, %v2788
  %v2832 = vpack.c.bf16 %v2791, %v2790
  %v2833 = vpack.c.bf16 %v2793, %v2792
  %v2834 = vpack.c.bf16 %v2795, %v2794
  %v2835 = vpack.c.bf16 %v2797, %v2796
  %v2836 = vpack.c.bf16 %v2799, %v2798
  %v2837 = vpack.c.bf16 %v2801, %v2800
  %v2838 = vpack.c.bf16 %v2803, %v2802
  %v2839 = vpack.c.bf16 %v2805, %v2804
  %v2840 = vpack.c.bf16 %v2807, %v2806
  %v2841 = vpack.c.bf16 %v2809, %v2808
  %v2842 = vld [vmem:[%s7] sm:$0x77]
  %v2843 = vld [vmem:[%s7 + $0x8] sm:$0x77]
  %v2844 = vld [vmem:[%s8] sm:$0x3f]
  %2846 = vset.pattern.permute.xlu0 0
  %2847 = vperm.xlu0 %2846, %v2844
  %v2848 = vpop.permute.xlu0 %2847
  %v2852 = vunpack.c.l.b16 %v2842
  %v2853 = vunpack.c.h.b16 %v2842
  %v2854 = vunpack.c.l.b16 %v2843
  %v2855 = vunpack.c.h.b16 %v2843
  %v2856 = vpack.c.b16 %v2852, %v2852
  %v2857 = vpack.c.b16 %v2853, %v2853
  %v2858 = vpack.c.b16 %v2854, %v2854
  %v2859 = vpack.c.b16 %v2855, %v2855
  %2864 = vmatprep.subr.bf16.mxu0 0
  %2865 = vmatpush1.bf16.msra.mxu0 %v2810
  %2866 = vmatprep.subr.bf16.mxu0 0
  %2867 = vmatpush1.bf16.msra.mxu0 %v2811
  %2868 = vmatprep.subr.bf16.mxu0 0
  %2869 = vmatpush1.bf16.msra.mxu0 %v2812
  %2870 = vmatprep.subr.bf16.mxu0 0
  %2871 = vmatpush1.bf16.msra.mxu0 %v2813
  %2872 = vmatprep.subr.bf16.mxu0 0
  %2873 = vmatpush1.bf16.msra.mxu0 %v2814
  %2874 = vmatprep.subr.bf16.mxu0 0
  %2875 = vmatpush1.bf16.msra.mxu0 %v2815
  %2876 = vmatprep.subr.bf16.mxu0 0
  %2877 = vmatpush1.bf16.msra.mxu0 %v2816
  %2878 = vmatprep.subr.bf16.mxu0 0
  %2879 = vmatpush1.bf16.msra.mxu0 %v2817
  %2880 = vmatprep.subr.bf16.mxu0 0
  %2881 = vmatpush1.bf16.msra.mxu0 %v2818
  %2882 = vmatprep.subr.bf16.mxu0 0
  %2883 = vmatpush1.bf16.msra.mxu0 %v2819
  %2884 = vmatprep.subr.bf16.mxu0 0
  %2885 = vmatpush1.bf16.msra.mxu0 %v2820
  %2886 = vmatprep.subr.bf16.mxu0 0
  %2887 = vmatpush1.bf16.msra.mxu0 %v2821
  %2888 = vmatprep.subr.bf16.mxu0 0
  %2889 = vmatpush1.bf16.msra.mxu0 %v2822
  %2890 = vmatprep.subr.bf16.mxu0 0
  %2891 = vmatpush1.bf16.msra.mxu0 %v2823
  %2892 = vmatprep.subr.bf16.mxu0 0
  %2893 = vmatpush1.bf16.msra.mxu0 %v2824
  %2894 = vmatprep.subr.bf16.mxu0 0
  %2895 = vmatpush1.bf16.msra.mxu0 %v2825
  %2896 = vmatprep.mubr.bf16.mxu0 %v2857
  %2897 = vmatmul.mubr.bf16.gmra.mrb[0].mxu0 %v2856
  %v2898 = vpop.f32.mrb[0].mxu0
  %v2899 = vadd.f32 %v2848, %v2898
  %v2900 = vpop.f32.mrb[0].mxu0
  %v2901 = vpop.f32.mrb[0].mxu0
  %v2902 = vpop.f32.mrb[0].mxu0
  %2903 = vdwg.mxu0
  %2904 = vmatprep.subr.bf16.mxu0 0
  %2905 = vmatpush1.bf16.msra.mxu0 %v2826
  %2906 = vmatprep.subr.bf16.mxu0 0
  %2907 = vmatpush1.bf16.msra.mxu0 %v2827
  %2908 = vmatprep.subr.bf16.mxu0 0
  %2909 = vmatpush1.bf16.msra.mxu0 %v2828
  %2910 = vmatprep.subr.bf16.mxu0 0
  %2911 = vmatpush1.bf16.msra.mxu0 %v2829
  %2912 = vmatprep.subr.bf16.mxu0 0
  %2913 = vmatpush1.bf16.msra.mxu0 %v2830
  %2914 = vmatprep.subr.bf16.mxu0 0
  %2915 = vmatpush1.bf16.msra.mxu0 %v2831
  %2916 = vmatprep.subr.bf16.mxu0 0
  %2917 = vmatpush1.bf16.msra.mxu0 %v2832
  %2918 = vmatprep.subr.bf16.mxu0 0
  %2919 = vmatpush1.bf16.msra.mxu0 %v2833
  %2920 = vmatprep.subr.bf16.mxu0 0
  %2921 = vmatpush1.bf16.msra.mxu0 %v2834
  %2922 = vmatprep.subr.bf16.mxu0 0
  %2923 = vmatpush1.bf16.msra.mxu0 %v2835
  %2924 = vmatprep.subr.bf16.mxu0 0
  %2925 = vmatpush1.bf16.msra.mxu0 %v2836
  %2926 = vmatprep.subr.bf16.mxu0 0
  %2927 = vmatpush1.bf16.msra.mxu0 %v2837
  %2928 = vmatprep.subr.bf16.mxu0 0
  %2929 = vmatpush1.bf16.msra.mxu0 %v2838
  %2930 = vmatprep.subr.bf16.mxu0 0
  %2931 = vmatpush1.bf16.msra.mxu0 %v2839
  %2932 = vmatprep.subr.bf16.mxu0 0
  %2933 = vmatpush1.bf16.msra.mxu0 %v2840
  %2934 = vmatprep.subr.bf16.mxu0 0
  %2935 = vmatpush1.bf16.msra.mxu0 %v2841
  %2936 = vmatprep.mubr.bf16.mxu0 %v2859
  %2937 = vmatmul.mubr.bf16.gmra.mrb[0].mxu0 %v2858
  %v2938 = vpop.f32.mrb[0].mxu0
  %v2939 = vadd.f32 %v2899, %v2938
  %v2940 = vpop.f32.mrb[0].mxu0
  %v2941 = vpop.f32.mrb[0].mxu0
  %v2942 = vpop.f32.mrb[0].mxu0
  %2943 = vdwg.mxu0
  %vm2944 = vcmask 13312
  %2945 = vst.msk [vmem:[%s9] sm:$0x3f] %vm2944, %v2939
  // Predicated region
  $region38: #{qnetwork_forward.3} parent=0 // pred_check
    _
  $region39: #{qnetwork_forward.3} parent=0 // pred_check_branch
    %2947 = sbr.rel (0) target = $region41
  $region40: #{qnetwork_forward.3} parent=0 // pred_region
    _
  $region41: #{qnetwork_forward.3} parent=0 // pred_fallthru
    _
  // Predicated region
  $region42: #{qnetwork_forward.3} parent=0 // pred_check
    _
  $region43: #{qnetwork_forward.3} parent=0 // pred_check_branch
    %2949 = sbr.rel (0) target = $region45
  $region44: #{qnetwork_forward.3} parent=0 // pred_region
    _
  $region45: #{qnetwork_forward.3} parent=0 // pred_fallthru
    _

</llo_original>
